<compile_context>
chip_gen: v6e
topology: v6e:2x2x1
jax: 0.10.0
libtpu: 0.0.40
codegen_flags: <defaults>
</compile_context>

<pallas_src>
import functools
import math

import jax
import jax.numpy as jnp
from jax.experimental import pallas as pl
from jax.experimental.pallas import tpu as pltpu


# ----------------------------------------------------------------------------
# Hardware-aware sizing helpers
# ----------------------------------------------------------------------------
def _vmem_capacity():
    """Physical VMEM bytes (fallback is v7x-safe)."""
    try:
        return int(pltpu.get_tpu_info().vmem_capacity_bytes)
    except Exception:
        return 64 * 1024 * 1024


def _pick_tn(n, per_tn_bytes):
    """Largest lane-aligned (128-multiple) column tile of `n` whose double-buffered
    weight stream fits the budget.  Prefers an even tile count so a 'parallel'
    grid axis splits evenly across v7x's two TensorCores."""
    budget = min(_vmem_capacity() // 3, 24 * 1024 * 1024)
    cands = sorted({c for c in range(128, n + 1, 128) if n % c == 0}, reverse=True)
    if not cands:
        cands = [n]                           # non-128-multiple dims: full extent only
    fitting = [c for c in cands if 2 * c * per_tn_bytes <= budget] or [cands[-1]]
    even = [c for c in fitting if (n // c) % 2 == 0 or n // c == 1]
    tn = max(even) if even else max(fitting)
    return tn, n // tn


def _maybe_buffered(block_shape, index_map, nsteps, depth=3):
    """Weight-stream BlockSpec; 3-deep pipeline when the stream is long enough
    (per-step MXU work is tiny for small R, so the kernel is DMA-issue bound)."""
    if nsteps >= depth:
        try:
            return pl.BlockSpec(block_shape, index_map, pipeline_mode=pl.Buffered(depth))
        except Exception:
            pass
    return pl.BlockSpec(block_shape, index_map)


def _vmem_limit(need_bytes, floor_bytes):
    cap = _vmem_capacity()
    return int(min(max(need_bytes, floor_bytes), 0.9 * cap))


# ----------------------------------------------------------------------------
# Kernel 1: fused classifier1 (layer 0 + layer 1), full-K weight-column stream
# ----------------------------------------------------------------------------
def _classifier1_kernel(x_ref, w0_ref, b0_ref, w1_ref, b1_ref, o_ref, acc_ref):
    """Grid step j over W0 column tiles (tn wide):
         y_j   = relu(x @ W0[:, j] + b0[j])          # [R, tn] f32
         acc  += y_j(bf16) @ W1[j, :]                # [R, D1] f32
       finalize: o = relu(acc + b1)."""
    j = pl.program_id(0)
    f32 = jnp.float32

    @pl.when(j == 0)
    def _init():
        acc_ref[...] = jnp.zeros_like(acc_ref)

    y = jnp.dot(x_ref[...], w0_ref[...], preferred_element_type=f32)
    y = jnp.maximum(y + b0_ref[...].astype(f32), 0.0)
    acc_ref[...] += jnp.dot(y.astype(w1_ref.dtype), w1_ref[...],
                            preferred_element_type=f32)

    @pl.when(j == pl.num_programs(0) - 1)
    def _finalize():
        out = jnp.maximum(acc_ref[...] + b1_ref[...].astype(f32), 0.0)
        o_ref[...] = out.astype(o_ref.dtype)


def classifier1_fused(x_bf16, w0, b0, w1, b1):
    """relu(relu(x @ W0 + b0) @ W1 + b1) with both weight matrices streamed in one
    pipelined grid over W0 columns (no intermediate HBM round trip)."""
    R, K = x_bf16.shape
    Kw, N0 = w0.shape
    N0b, D1 = w1.shape
    assert K == Kw and N0 == N0b
    tn, nsteps = _pick_tn(N0, per_tn_bytes=(K + D1) * 2)   # bf16 W0 col + W1 row per tn
    nbuf = 3 if nsteps >= 3 else 2

    need = (R * K * 2                                 # resident bf16 activations
            + nbuf * tn * (K + D1) * 2                # buffered W0 / W1 tiles
            + nbuf * tn * 4 + 2 * D1 * 4              # biases
            + 2 * R * D1 * 2 + R * D1 * 4)            # output + f32 accumulator
    flops = 2 * R * K * N0 + 2 * R * N0 * D1
    bytes_accessed = (R * K * 2 + K * N0 * 2 + N0 * D1 * 2
                      + N0 * 4 + D1 * 4 + R * D1 * 2)

    return pl.pallas_call(
        _classifier1_kernel,
        out_shape=jax.ShapeDtypeStruct((R, D1), jnp.bfloat16),
        grid_spec=pltpu.PrefetchScalarGridSpec(
            num_scalar_prefetch=0,
            grid=(nsteps,),
            in_specs=[
                pl.BlockSpec((R, K), lambda j: (0, 0)),          # activations (resident)
                _maybe_buffered((K, tn), lambda j: (0, j), nsteps),   # W0 column tile
                pl.BlockSpec((1, tn), lambda j: (0, j)),         # b0 tile
                _maybe_buffered((tn, D1), lambda j: (j, 0), nsteps),  # W1 row tile
                pl.BlockSpec((1, D1), lambda j: (0, 0)),         # b1 (resident)
            ],
            out_specs=pl.BlockSpec((R, D1), lambda j: (0, 0)),
            scratch_shapes=[pltpu.VMEM((R, D1), jnp.float32)],
        ),
        compiler_params=pltpu.CompilerParams(
            dimension_semantics=("arbitrary",),                  # W0-col axis is a W1 reduction
            vmem_limit_bytes=_vmem_limit(need + (8 << 20), 32 << 20)),
        cost_estimate=pl.CostEstimate(
            flops=flops, transcendentals=0, bytes_accessed=bytes_accessed),
    )(x_bf16, w0, b0, w1, b1)


# ----------------------------------------------------------------------------
# Kernel 2: segment-feature matvec (hoisted seg part of classifier2 layer 0)
# ----------------------------------------------------------------------------
def _matvec_kernel(x_ref, w_ref, o_ref):
    o_ref[...] = jnp.dot(x_ref[...], w_ref[...],
                         preferred_element_type=jnp.float32).astype(o_ref.dtype)


def matvec_stream(x_bf16, w):
    """x @ w with full-K column-tiled weight stream (R is tiny, HBM bound)."""
    R, K = x_bf16.shape
    Kw, N = w.shape
    assert K == Kw
    tn, nsteps = _pick_tn(N, per_tn_bytes=K * 2)
    nbuf = 3 if nsteps >= 3 else 2
    need = R * K * 2 + nbuf * K * tn * 2 + 2 * R * tn * 4

    return pl.pallas_call(
        _matvec_kernel,
        out_shape=jax.ShapeDtypeStruct((R, N), jnp.float32),
        grid_spec=pltpu.PrefetchScalarGridSpec(
            num_scalar_prefetch=0,
            grid=(nsteps,),
            in_specs=[
                pl.BlockSpec((R, K), lambda j: (0, 0)),
                _maybe_buffered((K, tn), lambda j: (0, j), nsteps),
            ],
            out_specs=pl.BlockSpec((R, tn), lambda j: (0, j)),
        ),
        compiler_params=pltpu.CompilerParams(
            dimension_semantics=("parallel",),
            vmem_limit_bytes=_vmem_limit(need + (8 << 20), 32 << 20)),
        cost_estimate=pl.CostEstimate(
            flops=2 * R * K * N, transcendentals=0,
            bytes_accessed=R * K * 2 + K * N * 2 + R * N * 4),
    )(x_bf16, w)


# ----------------------------------------------------------------------------
# Kernel 3: fused tail — classifier2 + batched GAT heads + output + log_softmax
# ----------------------------------------------------------------------------
def _tail_kernel(x_ref, segv_ref,
                 c2w0p_ref, c2b0_ref, c2w1_ref, c2b1_ref, c2w2_ref, c2b2_ref,
                 gatw_ref, gata_ref, gow_ref, goa_ref, adj_ref,
                 o_ref, hcat_ref, *, alpha, heads, out_dim):
    f32 = jnp.float32

    def dense_relu(v, w_ref, b_ref, extra=None):
        y = jnp.dot(v.astype(w_ref.dtype), w_ref[...], preferred_element_type=f32)
        if extra is not None:
            y = y + extra
        return jnp.maximum(y + b_ref[...].astype(f32), 0.0)

    def elu(v):
        # guarded: exp only sees the (clamped) negative branch -> no overflow path
        return jnp.where(v > 0, v, jnp.exp(jnp.minimum(v, 0.0)) - 1.0)

    adj = adj_ref[...]

    def attention(wh, f1, f2):
        e = f1 + jnp.transpose(f2)                              # [N, N]
        e = jnp.where(e > 0, e, jnp.float32(alpha) * e)         # LeakyReLU
        e = jnp.where(adj > 0, e, jnp.full_like(e, -9e15))      # adjacency mask
        m = jnp.max(e, axis=1, keepdims=True)
        p = jnp.exp(e - m)
        attn = p * pl.reciprocal(jnp.sum(p, axis=1, keepdims=True), approx=True)
        return elu(jnp.dot(attn, wh, preferred_element_type=f32))

    # ---- classifier2 (dropout = identity in eval) ---------------------------
    y0 = dense_relu(x_ref[...], c2w0p_ref, c2b0_ref, extra=segv_ref[...].astype(f32))
    y1 = dense_relu(y0, c2w1_ref, c2b1_ref)
    gin = dense_relu(y1, c2w2_ref, c2b2_ref)                    # [N, gat_in]

    # ---- GAT heads: one wide W matmul + block-diagonal a-projection ---------
    hidden = gatw_ref.shape[1] // heads
    wh_all = jnp.dot(gin, gatw_ref[...], preferred_element_type=f32)    # [N, heads*hidden]
    f_all = jnp.dot(wh_all, gata_ref[...], preferred_element_type=f32)  # [N, heads*2]
    for h in range(heads):
        wh = wh_all[:, h * hidden:(h + 1) * hidden]
        hp = attention(wh, f_all[:, 2 * h:2 * h + 1], f_all[:, 2 * h + 1:2 * h + 2])
        hcat_ref[:, h * hidden:(h + 1) * hidden] = hp           # VMEM concat slab
    h_cat = hcat_ref[...]

    # ---- GAT output layer + ELU + exact log_softmax -------------------------
    wo = jnp.dot(h_cat, gow_ref[...], preferred_element_type=f32)       # [N, out_dim]
    fo = jnp.dot(wo, goa_ref[...], preferred_element_type=f32)          # [N, 2]
    ho = attention(wo, fo[:, 0:1], fo[:, 1:2])
    mm = jnp.max(ho, axis=1, keepdims=True)
    lse = jnp.log(jnp.sum(jnp.exp(ho - mm), axis=1, keepdims=True)) + mm
    ho = ho - lse

    pad = o_ref.shape[1] - out_dim
    if pad > 0:                                                 # lane-dense store
        ho = jnp.concatenate([ho, jnp.zeros((ho.shape[0], pad), f32)], axis=1)
    o_ref[...] = ho.astype(o_ref.dtype)


def grm_tail(pf, segv, params, adj, *, heads, max_rl_num, alpha):
    R = pf.shape[0]
    hidden = params["gat_w_all"].shape[1] // heads
    out_pad = ((max_rl_num + 127) // 128) * 128
    vmem = pl.BlockSpec(memory_space=pltpu.MemorySpace.VMEM)

    args = (pf, segv,
            params["c2_w0_p"], params["c2_b0"], params["c2_w1"], params["c2_b1"],
            params["c2_w2"], params["c2_b2"],
            params["gat_w_all"], params["gat_a_blk"],
            params["gat_out_w"], params["gat_out_a"], adj)
    need = sum(int(a.size) * a.dtype.itemsize for a in args)
    need += R * out_pad * 4 + R * heads * hidden * 4            # output + concat scratch

    out = pl.pallas_call(
        functools.partial(_tail_kernel, alpha=alpha, heads=heads, out_dim=max_rl_num),
        out_shape=jax.ShapeDtypeStruct((R, out_pad), jnp.float32),
        in_specs=[vmem] * 13,
        out_specs=vmem,
        scratch_shapes=[pltpu.VMEM((R, heads * hidden), jnp.float32)],
        compiler_params=pltpu.CompilerParams(
            vmem_limit_bytes=_vmem_limit(2 * need + (8 << 20), 24 << 20)),
    )(*args)
    return out[:, :max_rl_num]


# ----------------------------------------------------------------------------
# Parameter construction (mirrors __init__ / _initialize_weights)
# ----------------------------------------------------------------------------
def _xavier(key, fan_in, fan_out, gain=1.0):
    limit = gain * math.sqrt(6.0 / (fan_in + fan_out))
    return jax.random.uniform(key, (fan_in, fan_out), jnp.float32, -limit, limit)


def make_params(key, *, input_channel, feature_channel, max_rl_num,
                gat_input_channel, gat_hidden_channel, gat_head_count):
    inter = input_channel * 3
    concat = inter // 8 + feature_channel
    keys = jax.random.split(key, 9)
    bf16 = jnp.bfloat16
    p = {}
    # classifier1
    p["c1_w0"] = _xavier(keys[0], inter, inter // 4).astype(bf16)
    p["c1_b0"] = jnp.full((1, inter // 4), 1e-4, jnp.float32)
    p["c1_w1"] = _xavier(keys[1], inter // 4, inter // 8).astype(bf16)
    p["c1_b1"] = jnp.full((1, inter // 8), 1e-4, jnp.float32)
    # classifier2 layer 0, split into person-feature rows and seg-feature rows
    c2_w0 = _xavier(keys[2], concat, concat // 4)
    p["c2_w0_p"] = c2_w0[: inter // 8].astype(bf16)
    p["c2_w0_s"] = c2_w0[inter // 8:].astype(bf16)
    p["c2_b0"] = jnp.full((1, concat // 4), 1e-4, jnp.float32)
    p["c2_w1"] = _xavier(keys[3], concat // 4, concat // 8).astype(bf16)
    p["c2_b1"] = jnp.full((1, concat // 8), 1e-4, jnp.float32)
    p["c2_w2"] = _xavier(keys[4], concat // 8, gat_input_channel)          # small: keep f32
    p["c2_b2"] = jnp.full((1, gat_input_channel), 1e-4, jnp.float32)
    # GAT heads (kept stacked for the reference path)
    wk = jax.random.split(keys[5], gat_head_count)
    ak = jax.random.split(keys[6], gat_head_count)
    gat_w = jnp.stack([_xavier(wk[h], gat_input_channel, gat_hidden_channel, gain=1.414)
                       for h in range(gat_head_count)])                   # [H, gin, hid]
    gat_a = jnp.stack([_xavier(ak[h], gat_hidden_channel, 2, gain=1.414)
                       for h in range(gat_head_count)])                   # [H, hid, 2]
    p["gat_w"] = gat_w
    p["gat_a"] = gat_a
    # batched-head forms: one wide W matmul + block-diagonal a-projection
    p["gat_w_all"] = jnp.concatenate([gat_w[h] for h in range(gat_head_count)], axis=1)
    a_blk = jnp.zeros((gat_head_count * gat_hidden_channel, gat_head_count * 2), jnp.float32)
    for h in range(gat_head_count):
        a_blk = a_blk.at[h * gat_hidden_channel:(h + 1) * gat_hidden_channel,
                         2 * h:2 * h + 2].set(gat_a[h])
    p["gat_a_blk"] = a_blk
    # GAT output layer
    p["gat_out_w"] = _xavier(keys[7], gat_head_count * gat_hidden_channel, max_rl_num, gain=1.414)
    p["gat_out_a"] = _xavier(keys[8], max_rl_num, 2, gain=1.414)
    return p


# ----------------------------------------------------------------------------
# GRM forward: 3 pallas_calls (fused classifier1 stream, seg matvec, fused tail)
# ----------------------------------------------------------------------------
def grm_forward(params, person_input, seg_feature, adj_mat, *,
                gat_head_count, max_rl_num, gat_leaky_relu_alpha=0.2):
    R = person_input.shape[0]
    # fg / person_pair (lite): flatten union / person-a / person-b features; bf16
    # activations (the weights are bf16, so this only removes an in-kernel cast).
    contextual = person_input.reshape(R, -1).astype(jnp.bfloat16)          # [R, 3*C]

    # classifier1 layers 0+1 fused into one weight-streaming kernel -> [R, inter//8]
    pf = classifier1_fused(contextual, params["c1_w0"], params["c1_b0"],
                           params["c1_w1"], params["c1_b1"])

    # hoisted seg contribution of classifier2 layer 0 (computed once per forward)
    segv = matvec_stream(seg_feature[None, :].astype(jnp.bfloat16), params["c2_w0_s"])

    # fused tail: classifier2 + batched GAT heads + output layer + log_softmax
    return grm_tail(pf, segv, params, adj_mat,
                    heads=gat_head_count, max_rl_num=max_rl_num,
                    alpha=gat_leaky_relu_alpha)                            # [R, max_rl_num]


# ----------------------------------------------------------------------------
# Pure-JAX reference (same reconstruction & precision scheme) for a sanity check
# ----------------------------------------------------------------------------
def grm_reference(params, person_input, seg_feature, adj_mat, *,
                  gat_head_count, max_rl_num, gat_leaky_relu_alpha=0.2):
    f32 = jnp.float32
    R = person_input.shape[0]

    def dense(v, w, b, extra=None):
        y = jnp.dot(v.astype(w.dtype), w, preferred_element_type=f32)
        if extra is not None:
            y = y + extra
        return jnp.maximum(y + b, 0.0)

    ctx = person_input.reshape(R, -1)
    x = dense(ctx, params["c1_w0"], params["c1_b0"])
    pf = dense(x, params["c1_w1"], params["c1_b1"])
    segv = jnp.dot(seg_feature[None, :].astype(params["c2_w0_s"].dtype),
                   params["c2_w0_s"], preferred_element_type=f32)
    y0 = dense(pf, params["c2_w0_p"], params["c2_b0"], extra=segv)
    y1 = dense(y0, params["c2_w1"], params["c2_b1"])
    gin = dense(y1, params["c2_w2"], params["c2_b2"])

    def attention(wh, apack):
        f = jnp.dot(wh, apack)
        e = f[:, 0:1] + f[:, 1:2].T
        e = jnp.where(e > 0, e, gat_leaky_relu_alpha * e)
        e = jnp.where(adj_mat > 0, e, -9e15)
        a = jax.nn.softmax(e, axis=1)
        hp = jnp.dot(a, wh)
        return jnp.where(hp > 0, hp, jnp.exp(jnp.minimum(hp, 0.0)) - 1.0)

    houts = [attention(jnp.dot(gin, params["gat_w"][h]), params["gat_a"][h])
             for h in range(gat_head_count)]
    hcat = jnp.concatenate(houts, axis=1)
    ho = attention(jnp.dot(hcat, params["gat_out_w"]), params["gat_out_a"])
    return jax.nn.log_softmax(ho, axis=1)


# ----------------------------------------------------------------------------
# Demo
# ----------------------------------------------------------------------------
if __name__ == "__main__":
    # Small shapes consistent with the module structure (prod: 2048/4096).
    INPUT_CHANNEL = 128
    FEATURE_CHANNEL = 256
    MAX_RL_NUM = 6
    GAT_INPUT = 32
    GAT_HIDDEN = 64
    GAT_HEADS = 3
    RL_COUNT = 8

    key = jax.random.PRNGKey(0)
    k_param, k_pi, k_seg, k_adj = jax.random.split(key, 4)

    params = make_params(
        k_param,
        input_channel=INPUT_CHANNEL,
        feature_channel=FEATURE_CHANNEL,
        max_rl_num=MAX_RL_NUM,
        gat_input_channel=GAT_INPUT,
        gat_hidden_channel=GAT_HIDDEN,
        gat_head_count=GAT_HEADS,
    )

    person_input = jax.random.normal(k_pi, (RL_COUNT, 3, INPUT_CHANNEL), jnp.float32)
    seg_feature = jax.random.normal(k_seg, (FEATURE_CHANNEL,), jnp.float32)
    adj_mat = (jax.random.uniform(k_adj, (RL_COUNT, RL_COUNT)) > 0.5).astype(jnp.float32)
    adj_mat = adj_mat + jnp.eye(RL_COUNT, dtype=jnp.float32)  # self-loops keep softmax safe

    fwd = jax.jit(functools.partial(grm_forward, gat_head_count=GAT_HEADS,
                                    max_rl_num=MAX_RL_NUM, gat_leaky_relu_alpha=0.2))
    out = jax.block_until_ready(fwd(params, person_input, seg_feature, adj_mat))

    assert out.shape == (RL_COUNT, MAX_RL_NUM)
    assert bool(jnp.all(jnp.isfinite(out)))
    # rows of log_softmax should exp-sum to ~1
    assert bool(jnp.allclose(jnp.exp(out).sum(axis=1), 1.0, atol=1e-4))
    # agree with pure-JAX reference (bf16 weights/activations, f32 accumulation)
    ref = grm_reference(params, person_input, seg_feature, adj_mat,
                        gat_head_count=GAT_HEADS, max_rl_num=MAX_RL_NUM,
                        gat_leaky_relu_alpha=0.2)
    assert bool(jnp.allclose(out, ref, atol=5e-2, rtol=5e-2))
    print("KERNEL_OK")
</pallas_src>

<mosaic_0001>
module attributes {stable_mosaic.version = 11 : i64} {
  func.func @_classifier1_kernel(%arg0: i32, %arg1: memref<8x384xbf16, #tpu.memory_space<vmem>>, %arg2: memref<384x96xbf16, #tpu.memory_space<vmem>>, %arg3: memref<1x96xf32, #tpu.memory_space<vmem>>, %arg4: memref<96x48xbf16, #tpu.memory_space<vmem>>, %arg5: memref<1x48xf32, #tpu.memory_space<vmem>>, %arg6: memref<8x48xbf16, #tpu.memory_space<vmem>>, %arg7: memref<8x48xf32, #tpu.memory_space<vmem>>) attributes {dimension_semantics = [#tpu.dimension_semantics<arbitrary>], iteration_bounds = array<i64: 1>, scalar_prefetch = 0 : i64, scratch_operands = 1 : i64, tpu.core_type = #tpu.core_type<tc>, window_params = [{pipeline_mode = #tpu.pipeline_mode<synchronous>, transform_indices = @transform_0, window_bounds = array<i64: 8, 384>}, {transform_indices = @transform_1, window_bounds = array<i64: 384, 96>}, {transform_indices = @transform_2, window_bounds = array<i64: 1, 96>}, {transform_indices = @transform_3, window_bounds = array<i64: 96, 48>}, {pipeline_mode = #tpu.pipeline_mode<synchronous>, transform_indices = @transform_4, window_bounds = array<i64: 1, 48>}, {pipeline_mode = #tpu.pipeline_mode<synchronous>, transform_indices = @transform_5, window_bounds = array<i64: 8, 48>}]} {
    %c0_i32 = arith.constant 0 : i32
    %0 = arith.cmpi eq, %arg0, %c0_i32 : i32
    %1 = arith.extui %0 : i1 to i32
    %c0_i32_0 = arith.constant 0 : i32
    %2 = arith.cmpi ne, %1, %c0_i32_0 : i32
    scf.if %2 {
      %cst_16 = arith.constant 0.000000e+00 : f32
      %20 = vector.broadcast %cst_16 : f32 to vector<8x48xf32>
      %c0_17 = arith.constant 0 : index
      %c0_18 = arith.constant 0 : index
      %21 = vector.load %arg7[%c0_17, %c0_18] : memref<8x48xf32, #tpu.memory_space<vmem>>, vector<8x48xf32>
      tpu.vector_store %arg7[%c0_17, %c0_18], %20 {strides = array<i32>} : memref<8x48xf32, #tpu.memory_space<vmem>>, vector<8x48xf32>,
    } else {
    }
    %c0 = arith.constant 0 : index
    %c0_1 = arith.constant 0 : index
    %3 = vector.load %arg1[%c0, %c0_1] : memref<8x384xbf16, #tpu.memory_space<vmem>>, vector<8x384xbf16>
    %c0_2 = arith.constant 0 : index
    %c0_3 = arith.constant 0 : index
    %4 = vector.load %arg2[%c0_2, %c0_3] : memref<384x96xbf16, #tpu.memory_space<vmem>>, vector<384x96xbf16>
    %cst = arith.constant dense<0.000000e+00> : vector<8x96xf32>
    %5 = tpu.matmul %3, %4, %cst {dimension_numbers = #tpu.dot_dimension_numbers<[1], [0], [0], [1], [0, 0, 1, 1], [], []>} : vector<8x384xbf16>, vector<384x96xbf16>, vector<8x96xf32> -> vector<8x96xf32>
    %c0_4 = arith.constant 0 : index
    %c0_5 = arith.constant 0 : index
    %6 = vector.load %arg3[%c0_4, %c0_5] : memref<1x96xf32, #tpu.memory_space<vmem>>, vector<1x96xf32>
    %7 = vector.broadcast %6 : vector<1x96xf32> to vector<8x96xf32>
    %8 = arith.addf %5, %7 : vector<8x96xf32>
    %cst_6 = arith.constant 0.000000e+00 : f32
    %9 = vector.broadcast %cst_6 : f32 to vector<8x96xf32>
    %10 = arith.maximumf %8, %9 : vector<8x96xf32>
    %c0_7 = arith.constant 0 : index
    %c0_8 = arith.constant 0 : index
    %11 = vector.load %arg7[%c0_7, %c0_8] : memref<8x48xf32, #tpu.memory_space<vmem>>, vector<8x48xf32>
    %12 = arith.truncf %10 : vector<8x96xf32> to vector<8x96xbf16>
    %c0_9 = arith.constant 0 : index
    %c0_10 = arith.constant 0 : index
    %13 = vector.load %arg4[%c0_9, %c0_10] : memref<96x48xbf16, #tpu.memory_space<vmem>>, vector<96x48xbf16>
    %cst_11 = arith.constant dense<0.000000e+00> : vector<8x48xf32>
    %14 = tpu.matmul %12, %13, %cst_11 {dimension_numbers = #tpu.dot_dimension_numbers<[1], [0], [0], [1], [0, 0, 1, 1], [], []>} : vector<8x96xbf16>, vector<96x48xbf16>, vector<8x48xf32> -> vector<8x48xf32>
    %15 = arith.addf %11, %14 : vector<8x48xf32>
    %c0_12 = arith.constant 0 : index
    %c0_13 = arith.constant 0 : index
    %16 = vector.load %arg7[%c0_12, %c0_13] : memref<8x48xf32, #tpu.memory_space<vmem>>, vector<8x48xf32>
    tpu.vector_store %arg7[%c0_12, %c0_13], %15 {strides = array<i32>} : memref<8x48xf32, #tpu.memory_space<vmem>>, vector<8x48xf32>,
    %c0_i32_14 = arith.constant 0 : i32
    %17 = arith.cmpi eq, %arg0, %c0_i32_14 : i32
    %18 = arith.extui %17 : i1 to i32
    %c0_i32_15 = arith.constant 0 : i32
    %19 = arith.cmpi ne, %18, %c0_i32_15 : i32
    scf.if %19 {
      %c0_16 = arith.constant 0 : index
      %c0_17 = arith.constant 0 : index
      %20 = vector.load %arg7[%c0_16, %c0_17] : memref<8x48xf32, #tpu.memory_space<vmem>>, vector<8x48xf32>
      %c0_18 = arith.constant 0 : index
      %c0_19 = arith.constant 0 : index
      %21 = vector.load %arg5[%c0_18, %c0_19] : memref<1x48xf32, #tpu.memory_space<vmem>>, vector<1x48xf32>
      %22 = vector.broadcast %21 : vector<1x48xf32> to vector<8x48xf32>
      %23 = arith.addf %20, %22 : vector<8x48xf32>
      %cst_20 = arith.constant 0.000000e+00 : f32
      %24 = vector.broadcast %cst_20 : f32 to vector<8x48xf32>
      %25 = arith.maximumf %23, %24 : vector<8x48xf32>
      %26 = arith.truncf %25 : vector<8x48xf32> to vector<8x48xbf16>
      %c0_21 = arith.constant 0 : index
      %c0_22 = arith.constant 0 : index
      %27 = vector.load %arg6[%c0_21, %c0_22] : memref<8x48xbf16, #tpu.memory_space<vmem>>, vector<8x48xbf16>
      tpu.vector_store %arg6[%c0_21, %c0_22], %26 {strides = array<i32>} : memref<8x48xbf16, #tpu.memory_space<vmem>>, vector<8x48xbf16>,
    } else {
    }
    return
  }
  func.func @transform_0(%arg0: i32) -> (i32, i32) {
    %c0_i32 = arith.constant 0 : i32
    %c0_i32_0 = arith.constant 0 : i32
    %c0_i32_1 = arith.constant 0 : i32
    return %c0_i32, %c0_i32_0 : i32, i32
  }
  func.func @transform_1(%arg0: i32) -> (i32, i32) {
    %c0_i32 = arith.constant 0 : i32
    %c0_i32_0 = arith.constant 0 : i32
    return %c0_i32, %arg0 : i32, i32
  }
  func.func @transform_2(%arg0: i32) -> (i32, i32) {
    %c0_i32 = arith.constant 0 : i32
    %c0_i32_0 = arith.constant 0 : i32
    return %c0_i32, %arg0 : i32, i32
  }
  func.func @transform_3(%arg0: i32) -> (i32, i32) {
    %c0_i32 = arith.constant 0 : i32
    %c0_i32_0 = arith.constant 0 : i32
    return %arg0, %c0_i32 : i32, i32
  }
  func.func @transform_4(%arg0: i32) -> (i32, i32) {
    %c0_i32 = arith.constant 0 : i32
    %c0_i32_0 = arith.constant 0 : i32
    %c0_i32_1 = arith.constant 0 : i32
    return %c0_i32, %c0_i32_0 : i32, i32
  }
  func.func @transform_5(%arg0: i32) -> (i32, i32) {
    %c0_i32 = arith.constant 0 : i32
    %c0_i32_0 = arith.constant 0 : i32
    %c0_i32_1 = arith.constant 0 : i32
    return %c0_i32, %c0_i32_0 : i32, i32
  }
}

module attributes {stable_mosaic.version = 11 : i64} {
  func.func @_matvec_kernel(%arg0: i32, %arg1: memref<1x256xbf16, #tpu.memory_space<vmem>>, %arg2: memref<256x76xbf16, #tpu.memory_space<vmem>>, %arg3: memref<1x76xf32, #tpu.memory_space<vmem>>) attributes {dimension_semantics = [#tpu.dimension_semantics<parallel>], iteration_bounds = array<i64: 1>, scalar_prefetch = 0 : i64, scratch_operands = 0 : i64, tpu.core_type = #tpu.core_type<tc>, window_params = [{pipeline_mode = #tpu.pipeline_mode<synchronous>, transform_indices = @transform_0, window_bounds = array<i64: 1, 256>}, {transform_indices = @transform_1, window_bounds = array<i64: 256, 76>}, {transform_indices = @transform_2, window_bounds = array<i64: 1, 76>}]} {
    %c0 = arith.constant 0 : index
    %c0_0 = arith.constant 0 : index
    %0 = vector.load %arg1[%c0, %c0_0] : memref<1x256xbf16, #tpu.memory_space<vmem>>, vector<1x256xbf16>
    %c0_1 = arith.constant 0 : index
    %c0_2 = arith.constant 0 : index
    %1 = vector.load %arg2[%c0_1, %c0_2] : memref<256x76xbf16, #tpu.memory_space<vmem>>, vector<256x76xbf16>
    %cst = arith.constant dense<0.000000e+00> : vector<1x76xf32>
    %2 = tpu.matmul %0, %1, %cst {dimension_numbers = #tpu.dot_dimension_numbers<[1], [0], [0], [1], [0, 0, 1, 1], [], []>} : vector<1x256xbf16>, vector<256x76xbf16>, vector<1x76xf32> -> vector<1x76xf32>
    %c0_3 = arith.constant 0 : index
    %c0_4 = arith.constant 0 : index
    %3 = vector.load %arg3[%c0_3, %c0_4] : memref<1x76xf32, #tpu.memory_space<vmem>>, vector<1x76xf32>
    tpu.vector_store %arg3[%c0_3, %c0_4], %2 {strides = array<i32>} : memref<1x76xf32, #tpu.memory_space<vmem>>, vector<1x76xf32>,
    return
  }
  func.func @transform_0(%arg0: i32) -> (i32, i32) {
    %c0_i32 = arith.constant 0 : i32
    %c0_i32_0 = arith.constant 0 : i32
    %c0_i32_1 = arith.constant 0 : i32
    return %c0_i32, %c0_i32_0 : i32, i32
  }
  func.func @transform_1(%arg0: i32) -> (i32, i32) {
    %c0_i32 = arith.constant 0 : i32
    %c0_i32_0 = arith.constant 0 : i32
    return %c0_i32, %arg0 : i32, i32
  }
  func.func @transform_2(%arg0: i32) -> (i32, i32) {
    %c0_i32 = arith.constant 0 : i32
    %c0_i32_0 = arith.constant 0 : i32
    return %c0_i32, %arg0 : i32, i32
  }
}

module attributes {stable_mosaic.version = 11 : i64} {
  func.func @_tail_kernel(%arg0: memref<8x48xbf16, #tpu.memory_space<vmem>>, %arg1: memref<1x76xf32, #tpu.memory_space<vmem>>, %arg2: memref<48x76xbf16, #tpu.memory_space<vmem>>, %arg3: memref<1x76xf32, #tpu.memory_space<vmem>>, %arg4: memref<76x38xbf16, #tpu.memory_space<vmem>>, %arg5: memref<1x38xf32, #tpu.memory_space<vmem>>, %arg6: memref<38x32xf32, #tpu.memory_space<vmem>>, %arg7: memref<1x32xf32, #tpu.memory_space<vmem>>, %arg8: memref<32x192xf32, #tpu.memory_space<vmem>>, %arg9: memref<192x6xf32, #tpu.memory_space<vmem>>, %arg10: memref<192x6xf32, #tpu.memory_space<vmem>>, %arg11: memref<6x2xf32, #tpu.memory_space<vmem>>, %arg12: memref<8x8xf32, #tpu.memory_space<vmem>>, %arg13: memref<8x128xf32, #tpu.memory_space<vmem>>, %arg14: memref<8x192xf32, #tpu.memory_space<vmem>>) attributes {dimension_semantics = [], scalar_prefetch = 0 : i64, scratch_operands = 1 : i64, tpu.core_type = #tpu.core_type<tc>} {
    %c0 = arith.constant 0 : index
    %c0_0 = arith.constant 0 : index
    %0 = vector.load %arg12[%c0, %c0_0] : memref<8x8xf32, #tpu.memory_space<vmem>>, vector<8x8xf32>
    %c0_1 = arith.constant 0 : index
    %c0_2 = arith.constant 0 : index
    %1 = vector.load %arg0[%c0_1, %c0_2] : memref<8x48xbf16, #tpu.memory_space<vmem>>, vector<8x48xbf16>
    %c0_3 = arith.constant 0 : index
    %c0_4 = arith.constant 0 : index
    %2 = vector.load %arg1[%c0_3, %c0_4] : memref<1x76xf32, #tpu.memory_space<vmem>>, vector<1x76xf32>
    %c0_5 = arith.constant 0 : index
    %c0_6 = arith.constant 0 : index
    %3 = vector.load %arg2[%c0_5, %c0_6] : memref<48x76xbf16, #tpu.memory_space<vmem>>, vector<48x76xbf16>
    %cst = arith.constant dense<0.000000e+00> : vector<8x76xf32>
    %4 = tpu.matmul %1, %3, %cst {dimension_numbers = #tpu.dot_dimension_numbers<[1], [0], [0], [1], [0, 0, 1, 1], [], []>} : vector<8x48xbf16>, vector<48x76xbf16>, vector<8x76xf32> -> vector<8x76xf32>
    %5 = vector.broadcast %2 : vector<1x76xf32> to vector<8x76xf32>
    %6 = arith.addf %4, %5 : vector<8x76xf32>
    %c0_7 = arith.constant 0 : index
    %c0_8 = arith.constant 0 : index
    %7 = vector.load %arg3[%c0_7, %c0_8] : memref<1x76xf32, #tpu.memory_space<vmem>>, vector<1x76xf32>
    %8 = vector.broadcast %7 : vector<1x76xf32> to vector<8x76xf32>
    %9 = arith.addf %6, %8 : vector<8x76xf32>
    %cst_9 = arith.constant 0.000000e+00 : f32
    %10 = vector.broadcast %cst_9 : f32 to vector<8x76xf32>
    %11 = arith.maximumf %9, %10 : vector<8x76xf32>
    %12 = arith.truncf %11 : vector<8x76xf32> to vector<8x76xbf16>
    %c0_10 = arith.constant 0 : index
    %c0_11 = arith.constant 0 : index
    %13 = vector.load %arg4[%c0_10, %c0_11] : memref<76x38xbf16, #tpu.memory_space<vmem>>, vector<76x38xbf16>
    %cst_12 = arith.constant dense<0.000000e+00> : vector<8x38xf32>
    %14 = tpu.matmul %12, %13, %cst_12 {dimension_numbers = #tpu.dot_dimension_numbers<[1], [0], [0], [1], [0, 0, 1, 1], [], []>} : vector<8x76xbf16>, vector<76x38xbf16>, vector<8x38xf32> -> vector<8x38xf32>
    %c0_13 = arith.constant 0 : index
    %c0_14 = arith.constant 0 : index
    %15 = vector.load %arg5[%c0_13, %c0_14] : memref<1x38xf32, #tpu.memory_space<vmem>>, vector<1x38xf32>
    %16 = vector.broadcast %15 : vector<1x38xf32> to vector<8x38xf32>
    %17 = arith.addf %14, %16 : vector<8x38xf32>
    %cst_15 = arith.constant 0.000000e+00 : f32
    %18 = vector.broadcast %cst_15 : f32 to vector<8x38xf32>
    %19 = arith.maximumf %17, %18 : vector<8x38xf32>
    %c0_16 = arith.constant 0 : index
    %c0_17 = arith.constant 0 : index
    %20 = vector.load %arg6[%c0_16, %c0_17] : memref<38x32xf32, #tpu.memory_space<vmem>>, vector<38x32xf32>
    %cst_18 = arith.constant dense<0.000000e+00> : vector<8x32xf32>
    %21 = tpu.matmul %19, %20, %cst_18 {dimension_numbers = #tpu.dot_dimension_numbers<[1], [0], [0], [1], [0, 0, 1, 1], [], []>} : vector<8x38xf32>, vector<38x32xf32>, vector<8x32xf32> -> vector<8x32xf32>
    %c0_19 = arith.constant 0 : index
    %c0_20 = arith.constant 0 : index
    %22 = vector.load %arg7[%c0_19, %c0_20] : memref<1x32xf32, #tpu.memory_space<vmem>>, vector<1x32xf32>
    %23 = vector.broadcast %22 : vector<1x32xf32> to vector<8x32xf32>
    %24 = arith.addf %21, %23 : vector<8x32xf32>
    %cst_21 = arith.constant 0.000000e+00 : f32
    %25 = vector.broadcast %cst_21 : f32 to vector<8x32xf32>
    %26 = arith.maximumf %24, %25 : vector<8x32xf32>
    %c0_22 = arith.constant 0 : index
    %c0_23 = arith.constant 0 : index
    %27 = vector.load %arg8[%c0_22, %c0_23] : memref<32x192xf32, #tpu.memory_space<vmem>>, vector<32x192xf32>
    %cst_24 = arith.constant dense<0.000000e+00> : vector<8x192xf32>
    %28 = tpu.matmul %26, %27, %cst_24 {dimension_numbers = #tpu.dot_dimension_numbers<[1], [0], [0], [1], [0, 0, 1, 1], [], []>} : vector<8x32xf32>, vector<32x192xf32>, vector<8x192xf32> -> vector<8x192xf32>
    %c0_25 = arith.constant 0 : index
    %c0_26 = arith.constant 0 : index
    %29 = vector.load %arg9[%c0_25, %c0_26] : memref<192x6xf32, #tpu.memory_space<vmem>>, vector<192x6xf32>
    %cst_27 = arith.constant dense<0.000000e+00> : vector<8x6xf32>
    %30 = tpu.matmul %28, %29, %cst_27 {dimension_numbers = #tpu.dot_dimension_numbers<[1], [0], [0], [1], [0, 0, 1, 1], [], []>} : vector<8x192xf32>, vector<192x6xf32>, vector<8x6xf32> -> vector<8x6xf32>
    %31 = vector.extract_strided_slice %28 {offsets = [0, 0], sizes = [8, 64], strides = [1, 1]} : vector<8x192xf32> to vector<8x64xf32>
    %32 = vector.extract_strided_slice %30 {offsets = [0, 0], sizes = [8, 1], strides = [1, 1]} : vector<8x6xf32> to vector<8x1xf32>
    %33 = vector.extract_strided_slice %30 {offsets = [0, 1], sizes = [8, 1], strides = [1, 1]} : vector<8x6xf32> to vector<8x1xf32>
    %34 = tpu.transpose %33, [1, 0] : vector<8x1xf32> -> vector<1x8xf32>
    %35 = vector.broadcast %32 : vector<8x1xf32> to vector<8x8xf32>
    %36 = vector.broadcast %34 : vector<1x8xf32> to vector<8x8xf32>
    %37 = arith.addf %35, %36 : vector<8x8xf32>
    %cst_28 = arith.constant 0.000000e+00 : f32
    %38 = vector.broadcast %cst_28 : f32 to vector<8x8xf32>
    %39 = arith.cmpf ogt, %37, %38 : vector<8x8xf32>
    %cst_29 = arith.constant 2.000000e-01 : f32
    %40 = vector.broadcast %cst_29 : f32 to vector<8x8xf32>
    %41 = arith.mulf %40, %37 : vector<8x8xf32>
    %42 = arith.select %39, %37, %41 : vector<8x8xi1>, vector<8x8xf32>
    %cst_30 = arith.constant 0.000000e+00 : f32
    %43 = vector.broadcast %cst_30 : f32 to vector<8x8xf32>
    %44 = arith.cmpf ogt, %0, %43 : vector<8x8xf32>
    %cst_31 = arith.constant -9.000000e+15 : f32
    %45 = vector.broadcast %cst_31 : f32 to vector<8x8xf32>
    %46 = arith.select %44, %42, %45 : vector<8x8xi1>, vector<8x8xf32>
    %cst_32 = arith.constant dense<0xFF800000> : vector<8xf32>
    %47 = vector.multi_reduction <maximumf>, %46, %cst_32 [1] : vector<8x8xf32> to vector<8xf32>
    %48 = vector.shape_cast %47 : vector<8xf32> to vector<8x1xf32>
    %49 = vector.broadcast %48 : vector<8x1xf32> to vector<8x8xf32>
    %50 = arith.subf %46, %49 : vector<8x8xf32>
    %51 = math.exp %50 : vector<8x8xf32>
    %cst_33 = arith.constant dense<0.000000e+00> : vector<8xf32>
    %52 = vector.multi_reduction <add>, %51, %cst_33 [1] : vector<8x8xf32> to vector<8xf32>
    %53 = vector.shape_cast %52 : vector<8xf32> to vector<8x1xf32>
    %54 = tpu.reciprocal %53 {approx = true} : vector<8x1xf32> -> vector<8x1xf32>
    %55 = vector.broadcast %54 : vector<8x1xf32> to vector<8x8xf32>
    %56 = arith.mulf %51, %55 : vector<8x8xf32>
    %cst_34 = arith.constant dense<0.000000e+00> : vector<8x64xf32>
    %57 = tpu.matmul %56, %31, %cst_34 {dimension_numbers = #tpu.dot_dimension_numbers<[1], [0], [0], [1], [0, 0, 1, 1], [], []>} : vector<8x8xf32>, vector<8x64xf32>, vector<8x64xf32> -> vector<8x64xf32>
    %cst_35 = arith.constant 0.000000e+00 : f32
    %58 = vector.broadcast %cst_35 : f32 to vector<8x64xf32>
    %59 = arith.cmpf ogt, %57, %58 : vector<8x64xf32>
    %cst_36 = arith.constant 0.000000e+00 : f32
    %60 = vector.broadcast %cst_36 : f32 to vector<8x64xf32>
    %61 = arith.minimumf %57, %60 : vector<8x64xf32>
    %62 = math.exp %61 : vector<8x64xf32>
    %cst_37 = arith.constant 1.000000e+00 : f32
    %63 = vector.broadcast %cst_37 : f32 to vector<8x64xf32>
    %64 = arith.subf %62, %63 : vector<8x64xf32>
    %65 = arith.select %59, %57, %64 : vector<8x64xi1>, vector<8x64xf32>
    %c0_38 = arith.constant 0 : index
    %c0_39 = arith.constant 0 : index
    %66 = vector.load %arg14[%c0_38, %c0_39] : memref<8x192xf32, #tpu.memory_space<vmem>>, vector<8x64xf32>
    tpu.vector_store %arg14[%c0_38, %c0_39], %65 {strides = array<i32>} : memref<8x192xf32, #tpu.memory_space<vmem>>, vector<8x64xf32>,
    %67 = vector.extract_strided_slice %28 {offsets = [0, 64], sizes = [8, 64], strides = [1, 1]} : vector<8x192xf32> to vector<8x64xf32>
    %68 = vector.extract_strided_slice %30 {offsets = [0, 2], sizes = [8, 1], strides = [1, 1]} : vector<8x6xf32> to vector<8x1xf32>
    %69 = vector.extract_strided_slice %30 {offsets = [0, 3], sizes = [8, 1], strides = [1, 1]} : vector<8x6xf32> to vector<8x1xf32>
    %70 = tpu.transpose %69, [1, 0] : vector<8x1xf32> -> vector<1x8xf32>
    %71 = vector.broadcast %68 : vector<8x1xf32> to vector<8x8xf32>
    %72 = vector.broadcast %70 : vector<1x8xf32> to vector<8x8xf32>
    %73 = arith.addf %71, %72 : vector<8x8xf32>
    %cst_40 = arith.constant 0.000000e+00 : f32
    %74 = vector.broadcast %cst_40 : f32 to vector<8x8xf32>
    %75 = arith.cmpf ogt, %73, %74 : vector<8x8xf32>
    %cst_41 = arith.constant 2.000000e-01 : f32
    %76 = vector.broadcast %cst_41 : f32 to vector<8x8xf32>
    %77 = arith.mulf %76, %73 : vector<8x8xf32>
    %78 = arith.select %75, %73, %77 : vector<8x8xi1>, vector<8x8xf32>
    %cst_42 = arith.constant 0.000000e+00 : f32
    %79 = vector.broadcast %cst_42 : f32 to vector<8x8xf32>
    %80 = arith.cmpf ogt, %0, %79 : vector<8x8xf32>
    %cst_43 = arith.constant -9.000000e+15 : f32
    %81 = vector.broadcast %cst_43 : f32 to vector<8x8xf32>
    %82 = arith.select %80, %78, %81 : vector<8x8xi1>, vector<8x8xf32>
    %cst_44 = arith.constant dense<0xFF800000> : vector<8xf32>
    %83 = vector.multi_reduction <maximumf>, %82, %cst_44 [1] : vector<8x8xf32> to vector<8xf32>
    %84 = vector.shape_cast %83 : vector<8xf32> to vector<8x1xf32>
    %85 = vector.broadcast %84 : vector<8x1xf32> to vector<8x8xf32>
    %86 = arith.subf %82, %85 : vector<8x8xf32>
    %87 = math.exp %86 : vector<8x8xf32>
    %cst_45 = arith.constant dense<0.000000e+00> : vector<8xf32>
    %88 = vector.multi_reduction <add>, %87, %cst_45 [1] : vector<8x8xf32> to vector<8xf32>
    %89 = vector.shape_cast %88 : vector<8xf32> to vector<8x1xf32>
    %90 = tpu.reciprocal %89 {approx = true} : vector<8x1xf32> -> vector<8x1xf32>
    %91 = vector.broadcast %90 : vector<8x1xf32> to vector<8x8xf32>
    %92 = arith.mulf %87, %91 : vector<8x8xf32>
    %cst_46 = arith.constant dense<0.000000e+00> : vector<8x64xf32>
    %93 = tpu.matmul %92, %67, %cst_46 {dimension_numbers = #tpu.dot_dimension_numbers<[1], [0], [0], [1], [0, 0, 1, 1], [], []>} : vector<8x8xf32>, vector<8x64xf32>, vector<8x64xf32> -> vector<8x64xf32>
    %cst_47 = arith.constant 0.000000e+00 : f32
    %94 = vector.broadcast %cst_47 : f32 to vector<8x64xf32>
    %95 = arith.cmpf ogt, %93, %94 : vector<8x64xf32>
    %cst_48 = arith.constant 0.000000e+00 : f32
    %96 = vector.broadcast %cst_48 : f32 to vector<8x64xf32>
    %97 = arith.minimumf %93, %96 : vector<8x64xf32>
    %98 = math.exp %97 : vector<8x64xf32>
    %cst_49 = arith.constant 1.000000e+00 : f32
    %99 = vector.broadcast %cst_49 : f32 to vector<8x64xf32>
    %100 = arith.subf %98, %99 : vector<8x64xf32>
    %101 = arith.select %95, %93, %100 : vector<8x64xi1>, vector<8x64xf32>
    %c0_50 = arith.constant 0 : index
    %c64 = arith.constant 64 : index
    %102 = vector.load %arg14[%c0_50, %c64] : memref<8x192xf32, #tpu.memory_space<vmem>>, vector<8x64xf32>
    tpu.vector_store %arg14[%c0_50, %c64], %101 {strides = array<i32>} : memref<8x192xf32, #tpu.memory_space<vmem>>, vector<8x64xf32>,
    %103 = vector.extract_strided_slice %28 {offsets = [0, 128], sizes = [8, 64], strides = [1, 1]} : vector<8x192xf32> to vector<8x64xf32>
    %104 = vector.extract_strided_slice %30 {offsets = [0, 4], sizes = [8, 1], strides = [1, 1]} : vector<8x6xf32> to vector<8x1xf32>
    %105 = vector.extract_strided_slice %30 {offsets = [0, 5], sizes = [8, 1], strides = [1, 1]} : vector<8x6xf32> to vector<8x1xf32>
    %106 = tpu.transpose %105, [1, 0] : vector<8x1xf32> -> vector<1x8xf32>
    %107 = vector.broadcast %104 : vector<8x1xf32> to vector<8x8xf32>
    %108 = vector.broadcast %106 : vector<1x8xf32> to vector<8x8xf32>
    %109 = arith.addf %107, %108 : vector<8x8xf32>
    %cst_51 = arith.constant 0.000000e+00 : f32
    %110 = vector.broadcast %cst_51 : f32 to vector<8x8xf32>
    %111 = arith.cmpf ogt, %109, %110 : vector<8x8xf32>
    %cst_52 = arith.constant 2.000000e-01 : f32
    %112 = vector.broadcast %cst_52 : f32 to vector<8x8xf32>
    %113 = arith.mulf %112, %109 : vector<8x8xf32>
    %114 = arith.select %111, %109, %113 : vector<8x8xi1>, vector<8x8xf32>
    %cst_53 = arith.constant 0.000000e+00 : f32
    %115 = vector.broadcast %cst_53 : f32 to vector<8x8xf32>
    %116 = arith.cmpf ogt, %0, %115 : vector<8x8xf32>
    %cst_54 = arith.constant -9.000000e+15 : f32
    %117 = vector.broadcast %cst_54 : f32 to vector<8x8xf32>
    %118 = arith.select %116, %114, %117 : vector<8x8xi1>, vector<8x8xf32>
    %cst_55 = arith.constant dense<0xFF800000> : vector<8xf32>
    %119 = vector.multi_reduction <maximumf>, %118, %cst_55 [1] : vector<8x8xf32> to vector<8xf32>
    %120 = vector.shape_cast %119 : vector<8xf32> to vector<8x1xf32>
    %121 = vector.broadcast %120 : vector<8x1xf32> to vector<8x8xf32>
    %122 = arith.subf %118, %121 : vector<8x8xf32>
    %123 = math.exp %122 : vector<8x8xf32>
    %cst_56 = arith.constant dense<0.000000e+00> : vector<8xf32>
    %124 = vector.multi_reduction <add>, %123, %cst_56 [1] : vector<8x8xf32> to vector<8xf32>
    %125 = vector.shape_cast %124 : vector<8xf32> to vector<8x1xf32>
    %126 = tpu.reciprocal %125 {approx = true} : vector<8x1xf32> -> vector<8x1xf32>
    %127 = vector.broadcast %126 : vector<8x1xf32> to vector<8x8xf32>
    %128 = arith.mulf %123, %127 : vector<8x8xf32>
    %cst_57 = arith.constant dense<0.000000e+00> : vector<8x64xf32>
    %129 = tpu.matmul %128, %103, %cst_57 {dimension_numbers = #tpu.dot_dimension_numbers<[1], [0], [0], [1], [0, 0, 1, 1], [], []>} : vector<8x8xf32>, vector<8x64xf32>, vector<8x64xf32> -> vector<8x64xf32>
    %cst_58 = arith.constant 0.000000e+00 : f32
    %130 = vector.broadcast %cst_58 : f32 to vector<8x64xf32>
    %131 = arith.cmpf ogt, %129, %130 : vector<8x64xf32>
    %cst_59 = arith.constant 0.000000e+00 : f32
    %132 = vector.broadcast %cst_59 : f32 to vector<8x64xf32>
    %133 = arith.minimumf %129, %132 : vector<8x64xf32>
    %134 = math.exp %133 : vector<8x64xf32>
    %cst_60 = arith.constant 1.000000e+00 : f32
    %135 = vector.broadcast %cst_60 : f32 to vector<8x64xf32>
    %136 = arith.subf %134, %135 : vector<8x64xf32>
    %137 = arith.select %131, %129, %136 : vector<8x64xi1>, vector<8x64xf32>
    %c0_61 = arith.constant 0 : index
    %c128 = arith.constant 128 : index
    %138 = vector.load %arg14[%c0_61, %c128] : memref<8x192xf32, #tpu.memory_space<vmem>>, vector<8x64xf32>
    tpu.vector_store %arg14[%c0_61, %c128], %137 {strides = array<i32>} : memref<8x192xf32, #tpu.memory_space<vmem>>, vector<8x64xf32>,
    %c0_62 = arith.constant 0 : index
    %c0_63 = arith.constant 0 : index
    %139 = vector.load %arg14[%c0_62, %c0_63] : memref<8x192xf32, #tpu.memory_space<vmem>>, vector<8x192xf32>
    %c0_64 = arith.constant 0 : index
    %c0_65 = arith.constant 0 : index
    %140 = vector.load %arg10[%c0_64, %c0_65] : memref<192x6xf32, #tpu.memory_space<vmem>>, vector<192x6xf32>
    %cst_66 = arith.constant dense<0.000000e+00> : vector<8x6xf32>
    %141 = tpu.matmul %139, %140, %cst_66 {dimension_numbers = #tpu.dot_dimension_numbers<[1], [0], [0], [1], [0, 0, 1, 1], [], []>} : vector<8x192xf32>, vector<192x6xf32>, vector<8x6xf32> -> vector<8x6xf32>
    %c0_67 = arith.constant 0 : index
    %c0_68 = arith.constant 0 : index
    %142 = vector.load %arg11[%c0_67, %c0_68] : memref<6x2xf32, #tpu.memory_space<vmem>>, vector<6x2xf32>
    %cst_69 = arith.constant dense<0.000000e+00> : vector<8x2xf32>
    %143 = tpu.matmul %141, %142, %cst_69 {dimension_numbers = #tpu.dot_dimension_numbers<[1], [0], [0], [1], [0, 0, 1, 1], [], []>} : vector<8x6xf32>, vector<6x2xf32>, vector<8x2xf32> -> vector<8x2xf32>
    %144 = vector.extract_strided_slice %143 {offsets = [0, 0], sizes = [8, 1], strides = [1, 1]} : vector<8x2xf32> to vector<8x1xf32>
    %145 = vector.extract_strided_slice %143 {offsets = [0, 1], sizes = [8, 1], strides = [1, 1]} : vector<8x2xf32> to vector<8x1xf32>
    %146 = tpu.transpose %145, [1, 0] : vector<8x1xf32> -> vector<1x8xf32>
    %147 = vector.broadcast %144 : vector<8x1xf32> to vector<8x8xf32>
    %148 = vector.broadcast %146 : vector<1x8xf32> to vector<8x8xf32>
    %149 = arith.addf %147, %148 : vector<8x8xf32>
    %cst_70 = arith.constant 0.000000e+00 : f32
    %150 = vector.broadcast %cst_70 : f32 to vector<8x8xf32>
    %151 = arith.cmpf ogt, %149, %150 : vector<8x8xf32>
    %cst_71 = arith.constant 2.000000e-01 : f32
    %152 = vector.broadcast %cst_71 : f32 to vector<8x8xf32>
    %153 = arith.mulf %152, %149 : vector<8x8xf32>
    %154 = arith.select %151, %149, %153 : vector<8x8xi1>, vector<8x8xf32>
    %cst_72 = arith.constant 0.000000e+00 : f32
    %155 = vector.broadcast %cst_72 : f32 to vector<8x8xf32>
    %156 = arith.cmpf ogt, %0, %155 : vector<8x8xf32>
    %cst_73 = arith.constant -9.000000e+15 : f32
    %157 = vector.broadcast %cst_73 : f32 to vector<8x8xf32>
    %158 = arith.select %156, %154, %157 : vector<8x8xi1>, vector<8x8xf32>
    %cst_74 = arith.constant dense<0xFF800000> : vector<8xf32>
    %159 = vector.multi_reduction <maximumf>, %158, %cst_74 [1] : vector<8x8xf32> to vector<8xf32>
    %160 = vector.shape_cast %159 : vector<8xf32> to vector<8x1xf32>
    %161 = vector.broadcast %160 : vector<8x1xf32> to vector<8x8xf32>
    %162 = arith.subf %158, %161 : vector<8x8xf32>
    %163 = math.exp %162 : vector<8x8xf32>
    %cst_75 = arith.constant dense<0.000000e+00> : vector<8xf32>
    %164 = vector.multi_reduction <add>, %163, %cst_75 [1] : vector<8x8xf32> to vector<8xf32>
    %165 = vector.shape_cast %164 : vector<8xf32> to vector<8x1xf32>
    %166 = tpu.reciprocal %165 {approx = true} : vector<8x1xf32> -> vector<8x1xf32>
    %167 = vector.broadcast %166 : vector<8x1xf32> to vector<8x8xf32>
    %168 = arith.mulf %163, %167 : vector<8x8xf32>
    %cst_76 = arith.constant dense<0.000000e+00> : vector<8x6xf32>
    %169 = tpu.matmul %168, %141, %cst_76 {dimension_numbers = #tpu.dot_dimension_numbers<[1], [0], [0], [1], [0, 0, 1, 1], [], []>} : vector<8x8xf32>, vector<8x6xf32>, vector<8x6xf32> -> vector<8x6xf32>
    %cst_77 = arith.constant 0.000000e+00 : f32
    %170 = vector.broadcast %cst_77 : f32 to vector<8x6xf32>
    %171 = arith.cmpf ogt, %169, %170 : vector<8x6xf32>
    %cst_78 = arith.constant 0.000000e+00 : f32
    %172 = vector.broadcast %cst_78 : f32 to vector<8x6xf32>
    %173 = arith.minimumf %169, %172 : vector<8x6xf32>
    %174 = math.exp %173 : vector<8x6xf32>
    %cst_79 = arith.constant 1.000000e+00 : f32
    %175 = vector.broadcast %cst_79 : f32 to vector<8x6xf32>
    %176 = arith.subf %174, %175 : vector<8x6xf32>
    %177 = arith.select %171, %169, %176 : vector<8x6xi1>, vector<8x6xf32>
    %cst_80 = arith.constant dense<0xFF800000> : vector<8xf32>
    %178 = vector.multi_reduction <maximumf>, %177, %cst_80 [1] : vector<8x6xf32> to vector<8xf32>
    %179 = vector.shape_cast %178 : vector<8xf32> to vector<8x1xf32>
    %180 = vector.broadcast %179 : vector<8x1xf32> to vector<8x6xf32>
    %181 = arith.subf %177, %180 : vector<8x6xf32>
    %182 = math.exp %181 : vector<8x6xf32>
    %cst_81 = arith.constant dense<0.000000e+00> : vector<8xf32>
    %183 = vector.multi_reduction <add>, %182, %cst_81 [1] : vector<8x6xf32> to vector<8xf32>
    %184 = vector.shape_cast %183 : vector<8xf32> to vector<8x1xf32>
    %185 = math.log %184 : vector<8x1xf32>
    %186 = arith.addf %185, %179 : vector<8x1xf32>
    %187 = vector.broadcast %186 : vector<8x1xf32> to vector<8x6xf32>
    %188 = arith.subf %177, %187 : vector<8x6xf32>
    %cst_82 = arith.constant 0.000000e+00 : f32
    %189 = vector.broadcast %cst_82 : f32 to vector<8x122xf32>
    %190 = tpu.concatenate %188, %189 in 1 : vector<8x6xf32>, vector<8x122xf32> -> vector<8x128xf32>
    %c0_83 = arith.constant 0 : index
    %c0_84 = arith.constant 0 : index
    %191 = vector.load %arg13[%c0_83, %c0_84] : memref<8x128xf32, #tpu.memory_space<vmem>>, vector<8x128xf32>
    tpu.vector_store %arg13[%c0_83, %c0_84], %190 {strides = array<i32>} : memref<8x128xf32, #tpu.memory_space<vmem>>, vector<8x128xf32>,
    return
  }
}

</mosaic_0001>

<llo_original>
// kernel: grm_forward.3
$region0: #{grm_forward.3}
  #allocation0 [shape = 'u32[]', space=smem, size = 0x4, offset = 0x4, fixed_abs, tag = 'smem constant byte address 0x4 - core index']
  #allocation1 [shape = 'u32[144,128]{1,0:T(1,128)}', space=vmem, size = 0x12000, scoped, tag = 'internal scratch']
  #allocation2 [shape = 'f32[8,48]{1,0:T(8,128)}', space=vmem, size = 0x1000, scoped, tag = 'scratch operand']
  %s0 = inlined_call_operand.vmem [shape: bf16[8,384], index: 0, kind: input, shape index: {}]
  %s1 = inlined_call_operand.vmem [shape: bf16[384,96], index: 1, kind: input, shape index: {}]
  %s2 = inlined_call_operand.vmem [shape: f32[1,96], index: 2, kind: input, shape index: {}]
  %s3 = inlined_call_operand.vmem [shape: bf16[96,48], index: 3, kind: input, shape index: {}]
  %s4 = inlined_call_operand.vmem [shape: f32[1,48], index: 4, kind: input, shape index: {}]
  %s5 = inlined_call_operand.vmem [shape: bf16[8,48], index: 5, kind: output, shape index: {}]
  %s6 = sld [smem:[#allocation0]]
  $region38: #{grm_forward.3} parent=0
    _
  %s8 = ssub.s32 1, %s6
  %s9 = scalar_select 0, %s8, %s6
  // Predicated region
  $region2: #{grm_forward.3} parent=0 // pred_check
    _
  $region3: #{grm_forward.3} parent=0 // pred_check_branch
    %11 = sbr.rel (0) target = $region5
  $region4: #{grm_forward.3} parent=0 // pred_region
    _
  $region5: #{grm_forward.3} parent=0 // pred_fallthru
    _
  // Predicated region
  $region6: #{grm_forward.3} parent=0 // pred_check
    _
  $region7: #{grm_forward.3} parent=0 // pred_check_branch
    %13 = sbr.rel (0) target = $region9
  $region8: #{grm_forward.3} parent=0 // pred_region
    _
  $region9: #{grm_forward.3} parent=0 // pred_fallthru
    _
  // Predicated region
  $region10: #{grm_forward.3} parent=0 // pred_check
    _
  $region11: #{grm_forward.3} parent=0 // pred_check_branch
    %15 = sbr.rel (0) target = $region13
  $region12: #{grm_forward.3} parent=0 // pred_region
    _
  $region13: #{grm_forward.3} parent=0 // pred_fallthru
    _
  // Predicated region
  $region14: #{grm_forward.3} parent=0 // pred_check
    _
  $region15: #{grm_forward.3} parent=0 // pred_check_branch
    %17 = sbr.rel (0) target = $region17
  $region16: #{grm_forward.3} parent=0 // pred_region
    _
  $region17: #{grm_forward.3} parent=0 // pred_fallthru
    _
  // Predicated region
  $region18: #{grm_forward.3} parent=0 // pred_check
    _
  $region19: #{grm_forward.3} parent=0 // pred_check_branch
    %19 = sbr.rel (0) target = $region21
  $region20: #{grm_forward.3} parent=0 // pred_region
    _
  $region21: #{grm_forward.3} parent=0 // pred_fallthru
    _
  %p21 = scmp.eq.s32.totalorder 0, 0
  // Predicated region
  $region22: #{grm_forward.3} parent=0 // pred_check
    %p22 = pneg %p21
  $region23: #{grm_forward.3} parent=0 // pred_check_branch
    %24 = sbr.rel (%p22) target = $region25
  $region24: #{grm_forward.3} parent=0 // pred_region
    %vm25 = vcmask 392192
    %26 = vst.msk [vmem:[#allocation2] sm:$0xff] %vm25, 0.0
  $region25: #{grm_forward.3} parent=0 // pred_fallthru
    _
  %v27 = vld [vmem:[%s0] sm:$0xff]
  %v28 = vld [vmem:[%s0 + $0x8] sm:$0xf]
  %v29 = vld [vmem:[%s1] sm:$0xf]
  %v30 = vld [vmem:[%s1 + $0x4] sm:$0xf]
  %v31 = vld [vmem:[%s1 + $0x8] sm:$0xf]
  %v32 = vld [vmem:[%s1 + $0xc] sm:$0xf]
  %v33 = vld [vmem:[%s1 + $0x10] sm:$0xf]
  %v34 = vld [vmem:[%s1 + $0x14] sm:$0xf]
  %v35 = vld [vmem:[%s1 + $0x18] sm:$0xf]
  %v36 = vld [vmem:[%s1 + $0x1c] sm:$0xf]
  %v37 = vld [vmem:[%s1 + $0x20] sm:$0xf]
  %v38 = vld [vmem:[%s1 + $0x24] sm:$0xf]
  %v39 = vld [vmem:[%s1 + $0x28] sm:$0xf]
  %v40 = vld [vmem:[%s1 + $0x2c] sm:$0xf]
  %v41 = vld [vmem:[%s1 + $0x30] sm:$0xf]
  %v42 = vld [vmem:[%s1 + $0x34] sm:$0xf]
  %v43 = vld [vmem:[%s1 + $0x38] sm:$0xf]
  %v44 = vld [vmem:[%s1 + $0x3c] sm:$0xf]
  %v45 = vld [vmem:[%s1 + $0x40] sm:$0xf]
  %v46 = vld [vmem:[%s1 + $0x44] sm:$0xf]
  %v47 = vld [vmem:[%s1 + $0x48] sm:$0xf]
  %v48 = vld [vmem:[%s1 + $0x4c] sm:$0xf]
  %v49 = vld [vmem:[%s1 + $0x50] sm:$0xf]
  %v50 = vld [vmem:[%s1 + $0x54] sm:$0xf]
  %v51 = vld [vmem:[%s1 + $0x58] sm:$0xf]
  %v52 = vld [vmem:[%s1 + $0x5c] sm:$0xf]
  %v53 = vld [vmem:[%s1 + $0x60] sm:$0xf]
  %v54 = vld [vmem:[%s1 + $0x64] sm:$0xf]
  %v55 = vld [vmem:[%s1 + $0x68] sm:$0xf]
  %v56 = vld [vmem:[%s1 + $0x6c] sm:$0xf]
  %v57 = vld [vmem:[%s1 + $0x70] sm:$0xf]
  %v58 = vld [vmem:[%s1 + $0x74] sm:$0xf]
  %v59 = vld [vmem:[%s1 + $0x78] sm:$0xf]
  %v60 = vld [vmem:[%s1 + $0x7c] sm:$0xf]
  %v61 = vld [vmem:[%s1 + $0x80] sm:$0xf]
  %v62 = vld [vmem:[%s1 + $0x84] sm:$0xf]
  %v63 = vld [vmem:[%s1 + $0x88] sm:$0xf]
  %v64 = vld [vmem:[%s1 + $0x8c] sm:$0xf]
  %v65 = vld [vmem:[%s1 + $0x90] sm:$0xf]
  %v66 = vld [vmem:[%s1 + $0x94] sm:$0xf]
  %v67 = vld [vmem:[%s1 + $0x98] sm:$0xf]
  %v68 = vld [vmem:[%s1 + $0x9c] sm:$0xf]
  %v69 = vld [vmem:[%s1 + $0xa0] sm:$0xf]
  %v70 = vld [vmem:[%s1 + $0xa4] sm:$0xf]
  %v71 = vld [vmem:[%s1 + $0xa8] sm:$0xf]
  %v72 = vld [vmem:[%s1 + $0xac] sm:$0xf]
  %v73 = vld [vmem:[%s1 + $0xb0] sm:$0xf]
  %v74 = vld [vmem:[%s1 + $0xb4] sm:$0xf]
  %v75 = vld [vmem:[%s1 + $0xb8] sm:$0xf]
  %v76 = vld [vmem:[%s1 + $0xbc] sm:$0xf]
  %v77 = vld [vmem:[%s2] sm:$0x1]
  %v79 = vlaneseq
  %v80 = vshrl.u32 %v79, 7
  %v81 = vsub.s32 0, %v80
  %v82 = vrot.slane %v77, %v81
  %v86 = vunpack.c.l.b16 %v27
  %v87 = vunpack.c.h.b16 %v27
  %v88 = vunpack.c.l.b16 %v28
  %v89 = vpack.c.b16 %v86, %v86
  %v90 = vpack.c.b16 %v87, %v87
  %v91 = vpack.c.b16 %v88, %v88
  %v143 = vunpack.c.l.b16 %v29
  %v144 = vunpack.c.l.b16 %v30
  %v145 = vunpack.c.l.b16 %v31
  %v146 = vunpack.c.l.b16 %v32
  %v147 = vunpack.c.l.b16 %v33
  %v148 = vunpack.c.l.b16 %v34
  %v149 = vunpack.c.l.b16 %v35
  %v150 = vunpack.c.l.b16 %v36
  %v151 = vunpack.c.l.b16 %v37
  %v152 = vunpack.c.l.b16 %v38
  %v153 = vunpack.c.l.b16 %v39
  %v154 = vunpack.c.l.b16 %v40
  %v155 = vunpack.c.l.b16 %v41
  %v156 = vunpack.c.l.b16 %v42
  %v157 = vunpack.c.l.b16 %v43
  %v158 = vunpack.c.l.b16 %v44
  %v159 = vunpack.c.l.b16 %v45
  %v160 = vunpack.c.l.b16 %v46
  %v161 = vunpack.c.l.b16 %v47
  %v162 = vunpack.c.l.b16 %v48
  %v163 = vunpack.c.l.b16 %v49
  %v164 = vunpack.c.l.b16 %v50
  %v165 = vunpack.c.l.b16 %v51
  %v166 = vunpack.c.l.b16 %v52
  %v167 = vunpack.c.l.b16 %v53
  %v168 = vunpack.c.l.b16 %v54
  %v169 = vunpack.c.l.b16 %v55
  %v170 = vunpack.c.l.b16 %v56
  %v171 = vunpack.c.l.b16 %v57
  %v172 = vunpack.c.l.b16 %v58
  %v173 = vunpack.c.l.b16 %v59
  %v174 = vunpack.c.l.b16 %v60
  %v175 = vunpack.c.l.b16 %v61
  %v176 = vunpack.c.l.b16 %v62
  %v177 = vunpack.c.l.b16 %v63
  %v178 = vunpack.c.l.b16 %v64
  %v179 = vunpack.c.l.b16 %v65
  %v180 = vunpack.c.l.b16 %v66
  %v181 = vunpack.c.l.b16 %v67
  %v182 = vunpack.c.l.b16 %v68
  %v183 = vunpack.c.l.b16 %v69
  %v184 = vunpack.c.l.b16 %v70
  %v185 = vunpack.c.l.b16 %v71
  %v186 = vunpack.c.l.b16 %v72
  %v187 = vunpack.c.l.b16 %v73
  %v188 = vunpack.c.l.b16 %v74
  %v189 = vunpack.c.l.b16 %v75
  %v190 = vunpack.c.l.b16 %v76
  %v191 = vpack.c.b16 %v144, %v143
  %v192 = vpack.c.b16 %v146, %v145
  %v193 = vpack.c.b16 %v148, %v147
  %v194 = vpack.c.b16 %v150, %v149
  %v195 = vpack.c.b16 %v152, %v151
  %v196 = vpack.c.b16 %v154, %v153
  %v197 = vpack.c.b16 %v156, %v155
  %v198 = vpack.c.b16 %v158, %v157
  %v199 = vpack.c.b16 %v160, %v159
  %v200 = vpack.c.b16 %v162, %v161
  %v201 = vpack.c.b16 %v164, %v163
  %v202 = vpack.c.b16 %v166, %v165
  %v203 = vpack.c.b16 %v168, %v167
  %v204 = vpack.c.b16 %v170, %v169
  %v205 = vpack.c.b16 %v172, %v171
  %v206 = vpack.c.b16 %v174, %v173
  %v207 = vpack.c.b16 %v176, %v175
  %v208 = vpack.c.b16 %v178, %v177
  %v209 = vpack.c.b16 %v180, %v179
  %v210 = vpack.c.b16 %v182, %v181
  %v211 = vpack.c.b16 %v184, %v183
  %v212 = vpack.c.b16 %v186, %v185
  %v213 = vpack.c.b16 %v188, %v187
  %v214 = vpack.c.b16 %v190, %v189
  %239 = vmatprep.subr.bf16.mxu0 0
  %240 = vmatpush1.bf16.msra.mxu0 %v198
  %241 = vmatprep.subr.bf16.mxu0 0
  %242 = vmatpush1.bf16.msra.mxu0 %v197
  %243 = vmatprep.subr.bf16.mxu0 0
  %244 = vmatpush1.bf16.msra.mxu0 %v196
  %245 = vmatprep.subr.bf16.mxu0 0
  %246 = vmatpush1.bf16.msra.mxu0 %v195
  %247 = vmatprep.subr.bf16.mxu0 0
  %248 = vmatpush1.bf16.msra.mxu0 %v194
  %249 = vmatprep.subr.bf16.mxu0 0
  %250 = vmatpush1.bf16.msra.mxu0 %v193
  %251 = vmatprep.subr.bf16.mxu0 0
  %252 = vmatpush1.bf16.msra.mxu0 %v192
  %253 = vmatprep.subr.bf16.mxu0 0
  %254 = vmatpush1.bf16.msra.mxu0 %v191
  %255 = vmatprep.subr.bf16.mxu0 0
  %256 = vmatpush2.bf16.msra.mxu0 %v206
  %257 = vmatprep.subr.bf16.mxu0 0
  %258 = vmatpush2.bf16.msra.mxu0 %v205
  %259 = vmatprep.subr.bf16.mxu0 0
  %260 = vmatpush2.bf16.msra.mxu0 %v204
  %261 = vmatprep.subr.bf16.mxu0 0
  %262 = vmatpush2.bf16.msra.mxu0 %v203
  %263 = vmatprep.subr.bf16.mxu0 0
  %264 = vmatpush2.bf16.msra.mxu0 %v202
  %265 = vmatprep.subr.bf16.mxu0 0
  %266 = vmatpush2.bf16.msra.mxu0 %v201
  %267 = vmatprep.subr.bf16.mxu0 0
  %268 = vmatpush2.bf16.msra.mxu0 %v200
  %269 = vmatprep.subr.bf16.mxu0 0
  %270 = vmatpush2.bf16.msra.mxu0 %v199
  %271 = vmatprep.mubr.bf16.mxu0 %v90
  %272 = vmatmul.mubr.bf16.gmra.mxu0 %v89
  %v273 = vpop.f32.mrf.mxu0
  %v274 = vadd.f32 %v82, %v273
  %v275 = vpop.f32.mrf.mxu0
  %v276 = vpop.f32.mrf.mxu0
  %v277 = vpop.f32.mrf.mxu0
  %278 = vdwg.mxu0
  %279 = vmatprep.subr.bf16.mxu0 0
  %280 = vmatpush1.bf16.msra.mxu0 %v214
  %281 = vmatprep.subr.bf16.mxu0 0
  %282 = vmatpush1.bf16.msra.mxu0 %v213
  %283 = vmatprep.subr.bf16.mxu0 0
  %284 = vmatpush1.bf16.msra.mxu0 %v212
  %285 = vmatprep.subr.bf16.mxu0 0
  %286 = vmatpush1.bf16.msra.mxu0 %v211
  %287 = vmatprep.subr.bf16.mxu0 0
  %288 = vmatpush1.bf16.msra.mxu0 %v210
  %289 = vmatprep.subr.bf16.mxu0 0
  %290 = vmatpush1.bf16.msra.mxu0 %v209
  %291 = vmatprep.subr.bf16.mxu0 0
  %292 = vmatpush1.bf16.msra.mxu0 %v208
  %293 = vmatprep.subr.bf16.mxu0 0
  %294 = vmatpush1.bf16.msra.mxu0 %v207
  %295 = vmatprep.subr.bf16.mxu0 0
  %296 = vmatpush2.bf16.msra.mxu0 0
  %297 = vmatprep.subr.bf16.mxu0 0
  %298 = vmatpush2.bf16.msra.mxu0 0
  %299 = vmatprep.subr.bf16.mxu0 0
  %300 = vmatpush2.bf16.msra.mxu0 0
  %301 = vmatprep.subr.bf16.mxu0 0
  %302 = vmatpush2.bf16.msra.mxu0 0
  %303 = vmatprep.subr.bf16.mxu0 0
  %304 = vmatpush2.bf16.msra.mxu0 0
  %305 = vmatprep.subr.bf16.mxu0 0
  %306 = vmatpush2.bf16.msra.mxu0 0
  %307 = vmatprep.subr.bf16.mxu0 0
  %308 = vmatpush2.bf16.msra.mxu0 0
  %309 = vmatprep.subr.bf16.mxu0 0
  %310 = vmatpush2.bf16.msra.mxu0 0
  %311 = vmatprep.mubr.bf16.mxu0 0
  %312 = vmatmul.mubr.bf16.gmra.mxu0 %v91
  %v313 = vpop.f32.mrf.mxu0
  %v314 = vadd.f32 %v274, %v313
  %v315 = vpop.f32.mrf.mxu0
  %v316 = vpop.f32.mrf.mxu0
  %v317 = vpop.f32.mrf.mxu0
  %318 = vdwg.mxu0
  %v319 = vmax.f32 %v314, 0.0
  %v320 = vld [vmem:[#allocation2] sm:$0xff]
  %v321 = vpack.c.bf16 %v319, %v319
  %v322 = vld [vmem:[%s3] sm:$0xf]
  %v323 = vld [vmem:[%s3 + $0x4] sm:$0xf]
  %v324 = vld [vmem:[%s3 + $0x8] sm:$0xf]
  %v325 = vld [vmem:[%s3 + $0xc] sm:$0xf]
  %v326 = vld [vmem:[%s3 + $0x10] sm:$0xf]
  %v327 = vld [vmem:[%s3 + $0x14] sm:$0xf]
  %v328 = vld [vmem:[%s3 + $0x18] sm:$0xf]
  %v329 = vld [vmem:[%s3 + $0x1c] sm:$0xf]
  %v330 = vld [vmem:[%s3 + $0x20] sm:$0xf]
  %v331 = vld [vmem:[%s3 + $0x24] sm:$0xf]
  %v332 = vld [vmem:[%s3 + $0x28] sm:$0xf]
  %v333 = vld [vmem:[%s3 + $0x2c] sm:$0xf]
  %v346 = vunpack.c.l.b16 %v322
  %v347 = vunpack.c.l.b16 %v323
  %v348 = vunpack.c.l.b16 %v324
  %v349 = vunpack.c.l.b16 %v325
  %v350 = vunpack.c.l.b16 %v326
  %v351 = vunpack.c.l.b16 %v327
  %v352 = vunpack.c.l.b16 %v328
  %v353 = vunpack.c.l.b16 %v329
  %v354 = vunpack.c.l.b16 %v330
  %v355 = vunpack.c.l.b16 %v331
  %v356 = vunpack.c.l.b16 %v332
  %v357 = vunpack.c.l.b16 %v333
  %v358 = vpack.c.b16 %v347, %v346
  %v359 = vpack.c.b16 %v349, %v348
  %v360 = vpack.c.b16 %v351, %v350
  %v361 = vpack.c.b16 %v353, %v352
  %v362 = vpack.c.b16 %v355, %v354
  %v363 = vpack.c.b16 %v357, %v356
  %vm370 = vcmask 785408
  %v372 = vsel %vm370, %v321, 0
  %374 = vmatprep.subr.bf16.mxu0 0
  %375 = vmatpush1.bf16.msra.mxu0 0
  %376 = vmatprep.subr.bf16.mxu0 0
  %377 = vmatpush1.bf16.msra.mxu0 0
  %378 = vmatprep.subr.bf16.mxu0 0
  %379 = vmatpush1.bf16.msra.mxu0 %v363
  %380 = vmatprep.subr.bf16.mxu0 0
  %381 = vmatpush1.bf16.msra.mxu0 %v362
  %382 = vmatprep.subr.bf16.mxu0 0
  %383 = vmatpush1.bf16.msra.mxu0 %v361
  %384 = vmatprep.subr.bf16.mxu0 0
  %385 = vmatpush1.bf16.msra.mxu0 %v360
  %386 = vmatprep.subr.bf16.mxu0 0
  %387 = vmatpush1.bf16.msra.mxu0 %v359
  %388 = vmatprep.subr.bf16.mxu0 0
  %389 = vmatpush1.bf16.msra.mxu0 %v358
  %390 = vmatprep.subr.bf16.mxu0 0
  %391 = vmatpush2.bf16.msra.mxu0 0
  %392 = vmatprep.subr.bf16.mxu0 0
  %393 = vmatpush2.bf16.msra.mxu0 0
  %394 = vmatprep.subr.bf16.mxu0 0
  %395 = vmatpush2.bf16.msra.mxu0 0
  %396 = vmatprep.subr.bf16.mxu0 0
  %397 = vmatpush2.bf16.msra.mxu0 0
  %398 = vmatprep.subr.bf16.mxu0 0
  %399 = vmatpush2.bf16.msra.mxu0 0
  %400 = vmatprep.subr.bf16.mxu0 0
  %401 = vmatpush2.bf16.msra.mxu0 0
  %402 = vmatprep.subr.bf16.mxu0 0
  %403 = vmatpush2.bf16.msra.mxu0 0
  %404 = vmatprep.subr.bf16.mxu0 0
  %405 = vmatpush2.bf16.msra.mxu0 0
  %406 = vmatprep.mubr.bf16.mxu0 0
  %407 = vmatmul.mubr.bf16.gmra.mxu0 %v372
  %v408 = vpop.f32.mrf.mxu0
  %v409 = vadd.f32 0.0, %v408
  %v410 = vpop.f32.mrf.mxu0
  %v411 = vpop.f32.mrf.mxu0
  %v412 = vpop.f32.mrf.mxu0
  %413 = vdwg.mxu0
  %v414 = vadd.f32 %v320, %v409
  %vm415 = vcmask 392192
  %416 = vst.msk [vmem:[#allocation2] sm:$0xff] %vm415, %v414
  // Predicated region
  $region26: #{grm_forward.3} parent=0 // pred_check
    %p417 = pneg %p21
  $region27: #{grm_forward.3} parent=0 // pred_check_branch
    %419 = sbr.rel (%p417) target = $region29
  $region28: #{grm_forward.3} parent=0 // pred_region
    %v420 = vld [vmem:[#allocation2] sm:$0xff]
    %v421 = vld [vmem:[%s4] sm:$0x1]
    %v423 = vlaneseq
    %v424 = vshrl.u32 %v423, 7
    %v425 = vsub.s32 0, %v424
    %v426 = vrot.slane %v421, %v425
    %v428 = vadd.f32 %v420, %v426
    %v429 = vmax.f32 %v428, 0.0
    %v430 = vpack.c.bf16 %v429, %v429
    %vm431 = vcmask 388096
    %432 = vst.msk [vmem:[%s5] sm:$0xf] %vm431, %v430
  $region29: #{grm_forward.3} parent=0 // pred_fallthru
    _
  // Predicated region
  $region30: #{grm_forward.3} parent=0 // pred_check
    _
  $region31: #{grm_forward.3} parent=0 // pred_check_branch
    %434 = sbr.rel (0) target = $region33
  $region32: #{grm_forward.3} parent=0 // pred_region
    _
  $region33: #{grm_forward.3} parent=0 // pred_fallthru
    _
  // Predicated region
  $region34: #{grm_forward.3} parent=0 // pred_check
    _
  $region35: #{grm_forward.3} parent=0 // pred_check_branch
    %436 = sbr.rel (0) target = $region37
  $region36: #{grm_forward.3} parent=0 // pred_region
    _
  $region37: #{grm_forward.3} parent=0 // pred_fallthru
    _

// kernel: grm_forward.4
$region0: #{grm_forward.4}
  #allocation0 [shape = 'u32[]', space=smem, size = 0x4, offset = 0x4, fixed_abs, tag = 'smem constant byte address 0x4 - core index']
  #allocation1 [shape = 'u32[144,128]{1,0:T(1,128)}', space=vmem, size = 0x12000, scoped, tag = 'internal scratch']
  %s0 = inlined_call_operand.vmem [shape: bf16[1,256], index: 0, kind: input, shape index: {}]
  %s1 = inlined_call_operand.vmem [shape: bf16[256,76], index: 1, kind: input, shape index: {}]
  %s2 = inlined_call_operand.vmem [shape: f32[1,76], index: 2, kind: output, shape index: {}]
  %s3 = sld [smem:[#allocation0]]
  $region18: #{grm_forward.4} parent=0
    _
  %s5 = ssub.s32 1, %s3
  %s6 = scalar_select 0, %s5, %s3
  // Predicated region
  $region2: #{grm_forward.4} parent=0 // pred_check
    _
  $region3: #{grm_forward.4} parent=0 // pred_check_branch
    %8 = sbr.rel (0) target = $region5
  $region4: #{grm_forward.4} parent=0 // pred_region
    _
  $region5: #{grm_forward.4} parent=0 // pred_fallthru
    _
  // Predicated region
  $region6: #{grm_forward.4} parent=0 // pred_check
    _
  $region7: #{grm_forward.4} parent=0 // pred_check_branch
    %10 = sbr.rel (0) target = $region9
  $region8: #{grm_forward.4} parent=0 // pred_region
    _
  $region9: #{grm_forward.4} parent=0 // pred_fallthru
    _
  %v12 = vld [vmem:[%s0] sm:$0x3]
  %v13 = vld [vmem:[%s1] sm:$0xf]
  %v14 = vld [vmem:[%s1 + $0x4] sm:$0xf]
  %v15 = vld [vmem:[%s1 + $0x8] sm:$0xf]
  %v16 = vld [vmem:[%s1 + $0xc] sm:$0xf]
  %v17 = vld [vmem:[%s1 + $0x10] sm:$0xf]
  %v18 = vld [vmem:[%s1 + $0x14] sm:$0xf]
  %v19 = vld [vmem:[%s1 + $0x18] sm:$0xf]
  %v20 = vld [vmem:[%s1 + $0x1c] sm:$0xf]
  %v21 = vld [vmem:[%s1 + $0x20] sm:$0xf]
  %v22 = vld [vmem:[%s1 + $0x24] sm:$0xf]
  %v23 = vld [vmem:[%s1 + $0x28] sm:$0xf]
  %v24 = vld [vmem:[%s1 + $0x2c] sm:$0xf]
  %v25 = vld [vmem:[%s1 + $0x30] sm:$0xf]
  %v26 = vld [vmem:[%s1 + $0x34] sm:$0xf]
  %v27 = vld [vmem:[%s1 + $0x38] sm:$0xf]
  %v28 = vld [vmem:[%s1 + $0x3c] sm:$0xf]
  %v29 = vld [vmem:[%s1 + $0x40] sm:$0xf]
  %v30 = vld [vmem:[%s1 + $0x44] sm:$0xf]
  %v31 = vld [vmem:[%s1 + $0x48] sm:$0xf]
  %v32 = vld [vmem:[%s1 + $0x4c] sm:$0xf]
  %v33 = vld [vmem:[%s1 + $0x50] sm:$0xf]
  %v34 = vld [vmem:[%s1 + $0x54] sm:$0xf]
  %v35 = vld [vmem:[%s1 + $0x58] sm:$0xf]
  %v36 = vld [vmem:[%s1 + $0x5c] sm:$0xf]
  %v37 = vld [vmem:[%s1 + $0x60] sm:$0xf]
  %v38 = vld [vmem:[%s1 + $0x64] sm:$0xf]
  %v39 = vld [vmem:[%s1 + $0x68] sm:$0xf]
  %v40 = vld [vmem:[%s1 + $0x6c] sm:$0xf]
  %v41 = vld [vmem:[%s1 + $0x70] sm:$0xf]
  %v42 = vld [vmem:[%s1 + $0x74] sm:$0xf]
  %v43 = vld [vmem:[%s1 + $0x78] sm:$0xf]
  %v44 = vld [vmem:[%s1 + $0x7c] sm:$0xf]
  %v47 = vunpack.c.l.s4 1966171168
  %v48 = vunpack.c.0.s8 %v47
  %v49 = vlaneseq
  %v50 = vshrl.u32 %v49, 7
  %v51 = vsub.s32 %v48, %v50
  %v52 = vrot.slane %v12, %v51
  %v53 = vcombine.high %v52, %v52
  %v55 = vunpack.c.l.s4 1966171168
  %v56 = vunpack.c.0.s8 %v55
  %v57 = vlaneseq
  %v58 = vshrl.u32 %v57, 7
  %v59 = vsub.s32 %v56, %v58
  %v60 = vrot.slane %v52, %v59
  %v62 = vunpack.c.l.s4 1966171168
  %v63 = vunpack.c.0.s8 %v62
  %v64 = vlaneseq
  %v65 = vshrl.u32 %v64, 7
  %v66 = vsub.s32 %v63, %v65
  %v67 = vrot.slane %v53, %v66
  %v102 = vunpack.c.l.b16 %v13
  %v103 = vunpack.c.l.b16 %v14
  %v104 = vunpack.c.l.b16 %v15
  %v105 = vunpack.c.l.b16 %v16
  %v106 = vunpack.c.l.b16 %v17
  %v107 = vunpack.c.l.b16 %v18
  %v108 = vunpack.c.l.b16 %v19
  %v109 = vunpack.c.l.b16 %v20
  %v110 = vunpack.c.l.b16 %v21
  %v111 = vunpack.c.l.b16 %v22
  %v112 = vunpack.c.l.b16 %v23
  %v113 = vunpack.c.l.b16 %v24
  %v114 = vunpack.c.l.b16 %v25
  %v115 = vunpack.c.l.b16 %v26
  %v116 = vunpack.c.l.b16 %v27
  %v117 = vunpack.c.l.b16 %v28
  %v118 = vunpack.c.l.b16 %v29
  %v119 = vunpack.c.l.b16 %v30
  %v120 = vunpack.c.l.b16 %v31
  %v121 = vunpack.c.l.b16 %v32
  %v122 = vunpack.c.l.b16 %v33
  %v123 = vunpack.c.l.b16 %v34
  %v124 = vunpack.c.l.b16 %v35
  %v125 = vunpack.c.l.b16 %v36
  %v126 = vunpack.c.l.b16 %v37
  %v127 = vunpack.c.l.b16 %v38
  %v128 = vunpack.c.l.b16 %v39
  %v129 = vunpack.c.l.b16 %v40
  %v130 = vunpack.c.l.b16 %v41
  %v131 = vunpack.c.l.b16 %v42
  %v132 = vunpack.c.l.b16 %v43
  %v133 = vunpack.c.l.b16 %v44
  %v134 = vpack.c.b16 %v103, %v102
  %v135 = vpack.c.b16 %v105, %v104
  %v136 = vpack.c.b16 %v107, %v106
  %v137 = vpack.c.b16 %v109, %v108
  %v138 = vpack.c.b16 %v111, %v110
  %v139 = vpack.c.b16 %v113, %v112
  %v140 = vpack.c.b16 %v115, %v114
  %v141 = vpack.c.b16 %v117, %v116
  %v142 = vpack.c.b16 %v119, %v118
  %v143 = vpack.c.b16 %v121, %v120
  %v144 = vpack.c.b16 %v123, %v122
  %v145 = vpack.c.b16 %v125, %v124
  %v146 = vpack.c.b16 %v127, %v126
  %v147 = vpack.c.b16 %v129, %v128
  %v148 = vpack.c.b16 %v131, %v130
  %v149 = vpack.c.b16 %v133, %v132
  %166 = vmatprep.subr.bf16.mxu0 0
  %167 = vmatpush1.bf16.msra.mxu0 %v141
  %168 = vmatprep.subr.bf16.mxu0 0
  %169 = vmatpush1.bf16.msra.mxu0 %v140
  %170 = vmatprep.subr.bf16.mxu0 0
  %171 = vmatpush1.bf16.msra.mxu0 %v139
  %172 = vmatprep.subr.bf16.mxu0 0
  %173 = vmatpush1.bf16.msra.mxu0 %v138
  %174 = vmatprep.subr.bf16.mxu0 0
  %175 = vmatpush1.bf16.msra.mxu0 %v137
  %176 = vmatprep.subr.bf16.mxu0 0
  %177 = vmatpush1.bf16.msra.mxu0 %v136
  %178 = vmatprep.subr.bf16.mxu0 0
  %179 = vmatpush1.bf16.msra.mxu0 %v135
  %180 = vmatprep.subr.bf16.mxu0 0
  %181 = vmatpush1.bf16.msra.mxu0 %v134
  %182 = vmatprep.subr.bf16.mxu0 0
  %183 = vmatpush2.bf16.msra.mxu0 %v149
  %184 = vmatprep.subr.bf16.mxu0 0
  %185 = vmatpush2.bf16.msra.mxu0 %v148
  %186 = vmatprep.subr.bf16.mxu0 0
  %187 = vmatpush2.bf16.msra.mxu0 %v147
  %188 = vmatprep.subr.bf16.mxu0 0
  %189 = vmatpush2.bf16.msra.mxu0 %v146
  %190 = vmatprep.subr.bf16.mxu0 0
  %191 = vmatpush2.bf16.msra.mxu0 %v145
  %192 = vmatprep.subr.bf16.mxu0 0
  %193 = vmatpush2.bf16.msra.mxu0 %v144
  %194 = vmatprep.subr.bf16.mxu0 0
  %195 = vmatpush2.bf16.msra.mxu0 %v143
  %196 = vmatprep.subr.bf16.mxu0 0
  %197 = vmatpush2.bf16.msra.mxu0 %v142
  %198 = vmatprep.mubr.bf16.mxu0 %v67
  %199 = vmatmul.mubr.bf16.gmra.mxu0 %v60
  %v200 = vpop.f32.mrf.mxu0
  %v201 = vadd.f32 0.0, %v200
  %v202 = vpop.f32.mrf.mxu0
  %v203 = vpop.f32.mrf.mxu0
  %v204 = vpop.f32.mrf.mxu0
  %205 = vdwg.mxu0
  %vm206 = vcmask 614400
  %207 = vst.msk [vmem:[%s2] sm:$0x1] %vm206, %v201
  // Predicated region
  $region10: #{grm_forward.4} parent=0 // pred_check
    _
  $region11: #{grm_forward.4} parent=0 // pred_check_branch
    %209 = sbr.rel (0) target = $region13
  $region12: #{grm_forward.4} parent=0 // pred_region
    _
  $region13: #{grm_forward.4} parent=0 // pred_fallthru
    _
  // Predicated region
  $region14: #{grm_forward.4} parent=0 // pred_check
    _
  $region15: #{grm_forward.4} parent=0 // pred_check_branch
    %211 = sbr.rel (0) target = $region17
  $region16: #{grm_forward.4} parent=0 // pred_region
    _
  $region17: #{grm_forward.4} parent=0 // pred_fallthru
    _

// kernel: grm_forward.5
$region0: #{grm_forward.5}
  #allocation0 [shape = 'u32[]', space=smem, size = 0x4, offset = 0x4, fixed_abs, tag = 'smem constant byte address 0x4 - core index']
  #allocation1 [shape = 'u32[144,128]{1,0:T(1,128)}', space=vmem, size = 0x12000, scoped, tag = 'internal scratch']
  #allocation2 [shape = 'f32[8,192]{1,0:T(8,128)}', space=vmem, size = 0x2000, scoped, tag = 'scratch operand']
  %s0 = inlined_call_operand.vmem [shape: bf16[8,48], index: 0, kind: input, shape index: {}]
  %s1 = inlined_call_operand.vmem [shape: f32[1,76], index: 1, kind: input, shape index: {}]
  %s2 = inlined_call_operand.vmem [shape: bf16[48,76], index: 2, kind: input, shape index: {}]
  %s3 = inlined_call_operand.vmem [shape: f32[1,76], index: 3, kind: input, shape index: {}]
  %s4 = inlined_call_operand.vmem [shape: bf16[76,38], index: 4, kind: input, shape index: {}]
  %s5 = inlined_call_operand.vmem [shape: f32[1,38], index: 5, kind: input, shape index: {}]
  %s6 = inlined_call_operand.vmem [shape: f32[38,32], index: 6, kind: input, shape index: {}]
  %s7 = inlined_call_operand.vmem [shape: f32[1,32], index: 7, kind: input, shape index: {}]
  %s8 = inlined_call_operand.vmem [shape: f32[32,192], index: 8, kind: input, shape index: {}]
  %s9 = inlined_call_operand.vmem [shape: f32[192,6], index: 9, kind: input, shape index: {}]
  %s10 = inlined_call_operand.vmem [shape: f32[192,6], index: 10, kind: input, shape index: {}]
  %s11 = inlined_call_operand.vmem [shape: f32[6,2], index: 11, kind: input, shape index: {}]
  %s12 = inlined_call_operand.vmem [shape: f32[8,8], index: 12, kind: input, shape index: {}]
  %s13 = inlined_call_operand.hbm [shape: f32[8,128], index: 13, kind: output, shape index: {}]
  %s14 = sld [smem:[#allocation0]]
  $region62: #{grm_forward.5} parent=0
    _
  %s16 = ssub.s32 1, %s14
  %s17 = scalar_select 0, %s16, %s14
  $region1: #{grm_forward.5} parent=0
    #allocation3 [shape = 'u8[4096]{0}', space=vmem, size = 0x1000, scoped, tag = 'output window, operand 0, single buffered']
    #allocation4 [shape = 's32[1]{0}', space=sflag, size = 0x4, scoped, tag = 'scoped memory for grm_forward.5']
    %18 = vsyncpa [#allocation4], 0
    // Predicated region
    $region2: #{grm_forward.5} parent=1 // pred_check
      _
    $region3: #{grm_forward.5} parent=1 // pred_check_branch
      %20 = sbr.rel (0) target = $region5
    $region4: #{grm_forward.5} parent=1 // pred_region
      _
    $region5: #{grm_forward.5} parent=1 // pred_fallthru
      _
    // Predicated region
    $region6: #{grm_forward.5} parent=1 // pred_check
      _
    $region7: #{grm_forward.5} parent=1 // pred_check_branch
      %22 = sbr.rel (0) target = $region9
    $region8: #{grm_forward.5} parent=1 // pred_region
      _
    $region9: #{grm_forward.5} parent=1 // pred_fallthru
      _
    // Predicated region
    $region10: #{grm_forward.5} parent=1 // pred_check
      _
    $region11: #{grm_forward.5} parent=1 // pred_check_branch
      %24 = sbr.rel (0) target = $region13
    $region12: #{grm_forward.5} parent=1 // pred_region
      _
    $region13: #{grm_forward.5} parent=1 // pred_fallthru
      _
    // Predicated region
    $region14: #{grm_forward.5} parent=1 // pred_check
      _
    $region15: #{grm_forward.5} parent=1 // pred_check_branch
      %26 = sbr.rel (0) target = $region17
    $region16: #{grm_forward.5} parent=1 // pred_region
      _
    $region17: #{grm_forward.5} parent=1 // pred_fallthru
      _
    // Predicated region
    $region18: #{grm_forward.5} parent=1 // pred_check
      _
    $region19: #{grm_forward.5} parent=1 // pred_check_branch
      %28 = sbr.rel (0) target = $region21
    $region20: #{grm_forward.5} parent=1 // pred_region
      _
    $region21: #{grm_forward.5} parent=1 // pred_fallthru
      _
    // Predicated region
    $region22: #{grm_forward.5} parent=1 // pred_check
      _
    $region23: #{grm_forward.5} parent=1 // pred_check_branch
      %30 = sbr.rel (0) target = $region25
    $region24: #{grm_forward.5} parent=1 // pred_region
      _
    $region25: #{grm_forward.5} parent=1 // pred_fallthru
      _
    // Predicated region
    $region26: #{grm_forward.5} parent=1 // pred_check
      _
    $region27: #{grm_forward.5} parent=1 // pred_check_branch
      %32 = sbr.rel (0) target = $region29
    $region28: #{grm_forward.5} parent=1 // pred_region
      _
    $region29: #{grm_forward.5} parent=1 // pred_fallthru
      _
    // Predicated region
    $region30: #{grm_forward.5} parent=1 // pred_check
      _
    $region31: #{grm_forward.5} parent=1 // pred_check_branch
      %34 = sbr.rel (0) target = $region33
    $region32: #{grm_forward.5} parent=1 // pred_region
      _
    $region33: #{grm_forward.5} parent=1 // pred_fallthru
      _
    // Predicated region
    $region34: #{grm_forward.5} parent=1 // pred_check
      _
    $region35: #{grm_forward.5} parent=1 // pred_check_branch
      %36 = sbr.rel (0) target = $region37
    $region36: #{grm_forward.5} parent=1 // pred_region
      _
    $region37: #{grm_forward.5} parent=1 // pred_fallthru
      _
    // Predicated region
    $region38: #{grm_forward.5} parent=1 // pred_check
      _
    $region39: #{grm_forward.5} parent=1 // pred_check_branch
      %38 = sbr.rel (0) target = $region41
    $region40: #{grm_forward.5} parent=1 // pred_region
      _
    $region41: #{grm_forward.5} parent=1 // pred_fallthru
      _
    // Predicated region
    $region42: #{grm_forward.5} parent=1 // pred_check
      _
    $region43: #{grm_forward.5} parent=1 // pred_check_branch
      %40 = sbr.rel (0) target = $region45
    $region44: #{grm_forward.5} parent=1 // pred_region
      _
    $region45: #{grm_forward.5} parent=1 // pred_fallthru
      _
    // Predicated region
    $region46: #{grm_forward.5} parent=1 // pred_check
      _
    $region47: #{grm_forward.5} parent=1 // pred_check_branch
      %42 = sbr.rel (0) target = $region49
    $region48: #{grm_forward.5} parent=1 // pred_region
      _
    $region49: #{grm_forward.5} parent=1 // pred_fallthru
      _
    // Predicated region
    $region50: #{grm_forward.5} parent=1 // pred_check
      _
    $region51: #{grm_forward.5} parent=1 // pred_check_branch
      %44 = sbr.rel (0) target = $region53
    $region52: #{grm_forward.5} parent=1 // pred_region
      _
    $region53: #{grm_forward.5} parent=1 // pred_fallthru
      _
    %v46 = vld [vmem:[%s12] sm:$0xff]
    %v47 = vld [vmem:[%s0] sm:$0xf]
    %v48 = vld [vmem:[%s1] sm:$0x1]
    %v49 = vld [vmem:[%s2] sm:$0xf]
    %v50 = vld [vmem:[%s2 + $0x4] sm:$0xf]
    %v51 = vld [vmem:[%s2 + $0x8] sm:$0xf]
    %v52 = vld [vmem:[%s2 + $0xc] sm:$0xf]
    %v53 = vld [vmem:[%s2 + $0x10] sm:$0xf]
    %v54 = vld [vmem:[%s2 + $0x14] sm:$0xf]
    %v56 = vlaneseq
    %v57 = vshrl.u32 %v56, 7
    %v58 = vsub.s32 0, %v57
    %v59 = vrot.slane %v48, %v58
    %v67 = vunpack.c.l.b16 %v49
    %v68 = vunpack.c.l.b16 %v50
    %v69 = vunpack.c.l.b16 %v51
    %v70 = vunpack.c.l.b16 %v52
    %v71 = vunpack.c.l.b16 %v53
    %v72 = vunpack.c.l.b16 %v54
    %v73 = vpack.c.b16 %v68, %v67
    %v74 = vpack.c.b16 %v70, %v69
    %v75 = vpack.c.b16 %v72, %v71
    %vm79 = vcmask 392192
    %v81 = vsel %vm79, %v47, 0
    %83 = vmatprep.subr.bf16.mxu0 0
    %84 = vmatpush1.bf16.msra.mxu0 0
    %85 = vmatprep.subr.bf16.mxu0 0
    %86 = vmatpush1.bf16.msra.mxu0 0
    %87 = vmatprep.subr.bf16.mxu0 0
    %88 = vmatpush1.bf16.msra.mxu0 0
    %89 = vmatprep.subr.bf16.mxu0 0
    %90 = vmatpush1.bf16.msra.mxu0 0
    %91 = vmatprep.subr.bf16.mxu0 0
    %92 = vmatpush1.bf16.msra.mxu0 0
    %93 = vmatprep.subr.bf16.mxu0 0
    %94 = vmatpush1.bf16.msra.mxu0 %v75
    %95 = vmatprep.subr.bf16.mxu0 0
    %96 = vmatpush1.bf16.msra.mxu0 %v74
    %97 = vmatprep.subr.bf16.mxu0 0
    %98 = vmatpush1.bf16.msra.mxu0 %v73
    %99 = vmatprep.subr.bf16.mxu0 0
    %100 = vmatpush2.bf16.msra.mxu0 0
    %101 = vmatprep.subr.bf16.mxu0 0
    %102 = vmatpush2.bf16.msra.mxu0 0
    %103 = vmatprep.subr.bf16.mxu0 0
    %104 = vmatpush2.bf16.msra.mxu0 0
    %105 = vmatprep.subr.bf16.mxu0 0
    %106 = vmatpush2.bf16.msra.mxu0 0
    %107 = vmatprep.subr.bf16.mxu0 0
    %108 = vmatpush2.bf16.msra.mxu0 0
    %109 = vmatprep.subr.bf16.mxu0 0
    %110 = vmatpush2.bf16.msra.mxu0 0
    %111 = vmatprep.subr.bf16.mxu0 0
    %112 = vmatpush2.bf16.msra.mxu0 0
    %113 = vmatprep.subr.bf16.mxu0 0
    %114 = vmatpush2.bf16.msra.mxu0 0
    %115 = vmatprep.mubr.bf16.mxu0 0
    %116 = vmatmul.mubr.bf16.gmra.mxu0 %v81
    %v117 = vpop.f32.mrf.mxu0
    %v118 = vadd.f32 %v59, %v117
    %v119 = vpop.f32.mrf.mxu0
    %v120 = vpop.f32.mrf.mxu0
    %v121 = vpop.f32.mrf.mxu0
    %122 = vdwg.mxu0
    %v123 = vld [vmem:[%s3] sm:$0x1]
    %v125 = vlaneseq
    %v126 = vshrl.u32 %v125, 7
    %v127 = vsub.s32 0, %v126
    %v128 = vrot.slane %v123, %v127
    %v130 = vadd.f32 %v118, %v128
    %v131 = vmax.f32 %v130, 0.0
    %v132 = vpack.c.bf16 %v131, %v131
    %v133 = vld [vmem:[%s4] sm:$0xf]
    %v134 = vld [vmem:[%s4 + $0x4] sm:$0xf]
    %v135 = vld [vmem:[%s4 + $0x8] sm:$0xf]
    %v136 = vld [vmem:[%s4 + $0xc] sm:$0xf]
    %v137 = vld [vmem:[%s4 + $0x10] sm:$0xf]
    %v138 = vld [vmem:[%s4 + $0x14] sm:$0xf]
    %v139 = vld [vmem:[%s4 + $0x18] sm:$0xf]
    %v140 = vld [vmem:[%s4 + $0x1c] sm:$0xf]
    %v141 = vld [vmem:[%s4 + $0x20] sm:$0xf]
    %v142 = vld [vmem:[%s4 + $0x24] sm:$0x3]
    %v143 = vld [vmem:[%s5] sm:$0x1]
    %v145 = vlaneseq
    %v146 = vshrl.u32 %v145, 7
    %v147 = vsub.s32 0, %v146
    %v148 = vrot.slane %v143, %v147
    %v160 = vunpack.c.l.b16 %v133
    %v161 = vunpack.c.l.b16 %v134
    %v162 = vunpack.c.l.b16 %v135
    %v163 = vunpack.c.l.b16 %v136
    %v164 = vunpack.c.l.b16 %v137
    %v165 = vunpack.c.l.b16 %v138
    %v166 = vunpack.c.l.b16 %v139
    %v167 = vunpack.c.l.b16 %v140
    %v168 = vunpack.c.l.b16 %v141
    %v169 = vunpack.c.l.b16 %v142
    %v170 = vpack.c.b16 %v161, %v160
    %v171 = vpack.c.b16 %v163, %v162
    %v172 = vpack.c.b16 %v165, %v164
    %v173 = vpack.c.b16 %v167, %v166
    %v174 = vpack.c.b16 %v169, %v168
    %vm179 = vcmask 621568
    %v181 = vsel %vm179, %v132, 0
    %vm183 = vcmask 1045504
    %v185 = vsel %vm183, %v174, 0
    %187 = vmatprep.subr.bf16.mxu0 0
    %188 = vmatpush1.bf16.msra.mxu0 0
    %189 = vmatprep.subr.bf16.mxu0 0
    %190 = vmatpush1.bf16.msra.mxu0 0
    %191 = vmatprep.subr.bf16.mxu0 0
    %192 = vmatpush1.bf16.msra.mxu0 0
    %193 = vmatprep.subr.bf16.mxu0 0
    %194 = vmatpush1.bf16.msra.mxu0 %v185
    %195 = vmatprep.subr.bf16.mxu0 0
    %196 = vmatpush1.bf16.msra.mxu0 %v173
    %197 = vmatprep.subr.bf16.mxu0 0
    %198 = vmatpush1.bf16.msra.mxu0 %v172
    %199 = vmatprep.subr.bf16.mxu0 0
    %200 = vmatpush1.bf16.msra.mxu0 %v171
    %201 = vmatprep.subr.bf16.mxu0 0
    %202 = vmatpush1.bf16.msra.mxu0 %v170
    %203 = vmatprep.subr.bf16.mxu0 0
    %204 = vmatpush2.bf16.msra.mxu0 0
    %205 = vmatprep.subr.bf16.mxu0 0
    %206 = vmatpush2.bf16.msra.mxu0 0
    %207 = vmatprep.subr.bf16.mxu0 0
    %208 = vmatpush2.bf16.msra.mxu0 0
    %209 = vmatprep.subr.bf16.mxu0 0
    %210 = vmatpush2.bf16.msra.mxu0 0
    %211 = vmatprep.subr.bf16.mxu0 0
    %212 = vmatpush2.bf16.msra.mxu0 0
    %213 = vmatprep.subr.bf16.mxu0 0
    %214 = vmatpush2.bf16.msra.mxu0 0
    %215 = vmatprep.subr.bf16.mxu0 0
    %216 = vmatpush2.bf16.msra.mxu0 0
    %217 = vmatprep.subr.bf16.mxu0 0
    %218 = vmatpush2.bf16.msra.mxu0 0
    %219 = vmatprep.mubr.bf16.mxu0 0
    %220 = vmatmul.mubr.bf16.gmra.mxu0 %v181
    %v221 = vpop.f32.mrf.mxu0
    %v222 = vadd.f32 %v148, %v221
    %v223 = vpop.f32.mrf.mxu0
    %v224 = vpop.f32.mrf.mxu0
    %v225 = vpop.f32.mrf.mxu0
    %226 = vdwg.mxu0
    %v227 = vmax.f32 %v222, 0.0
    %v228 = vld [vmem:[%s6] sm:$0xff]
    %v229 = vld [vmem:[%s6 + $0x8] sm:$0xff]
    %v230 = vld [vmem:[%s6 + $0x10] sm:$0xff]
    %v231 = vld [vmem:[%s6 + $0x18] sm:$0xff]
    %v232 = vld [vmem:[%s6 + $0x20] sm:$0x3f]
    %v233 = vld [vmem:[%s7] sm:$0x1]
    %v235 = vlaneseq
    %v236 = vshrl.u32 %v235, 7
    %v237 = vsub.s32 0, %v236
    %v238 = vrot.slane %v233, %v237
    %vm240 = vcmask 310272
    %v242 = vsel %vm240, %v227, 0
    %v245 = vsel %vm183, %v232, 0
    %247 = vmatprep.subr.mxu0 0.0
    %248 = vmatpush1.msra.mxu0 0.0
    %249 = vmatprep.subr.mxu0 0.0
    %250 = vmatpush1.msra.mxu0 0.0
    %251 = vmatprep.subr.mxu0 0.0
    %252 = vmatpush1.msra.mxu0 0.0
    %253 = vmatprep.subr.mxu0 0.0
    %254 = vmatpush1.msra.mxu0 0.0
    %255 = vmatprep.subr.mxu0 0.0
    %256 = vmatpush1.msra.mxu0 0.0
    %257 = vmatprep.subr.mxu0 0.0
    %258 = vmatpush1.msra.mxu0 0.0
    %259 = vmatprep.subr.mxu0 0.0
    %260 = vmatpush1.msra.mxu0 0.0
    %261 = vmatprep.subr.mxu0 0.0
    %262 = vmatpush1.msra.mxu0 0.0
    %263 = vmatprep.subr.mxu0 0.0
    %264 = vmatpush1.msra.mxu0 0.0
    %265 = vmatprep.subr.mxu0 0.0
    %266 = vmatpush1.msra.mxu0 0.0
    %267 = vmatprep.subr.mxu0 0.0
    %268 = vmatpush1.msra.mxu0 0.0
    %269 = vmatprep.subr.mxu0 0.0
    %270 = vmatpush1.msra.mxu0 %v245
    %271 = vmatprep.subr.mxu0 0.0
    %272 = vmatpush1.msra.mxu0 %v231
    %273 = vmatprep.subr.mxu0 0.0
    %274 = vmatpush1.msra.mxu0 %v230
    %275 = vmatprep.subr.mxu0 0.0
    %276 = vmatpush1.msra.mxu0 %v229
    %277 = vmatprep.subr.mxu0 0.0
    %278 = vmatpush1.msra.mxu0 %v228
    %279 = vmatprep.subr.mxu0 0.0
    %280 = vmatpush2.msra.mxu0 0.0
    %281 = vmatprep.subr.mxu0 0.0
    %282 = vmatpush2.msra.mxu0 0.0
    %283 = vmatprep.subr.mxu0 0.0
    %284 = vmatpush2.msra.mxu0 0.0
    %285 = vmatprep.subr.mxu0 0.0
    %286 = vmatpush2.msra.mxu0 0.0
    %287 = vmatprep.subr.mxu0 0.0
    %288 = vmatpush2.msra.mxu0 0.0
    %289 = vmatprep.subr.mxu0 0.0
    %290 = vmatpush2.msra.mxu0 0.0
    %291 = vmatprep.subr.mxu0 0.0
    %292 = vmatpush2.msra.mxu0 0.0
    %293 = vmatprep.subr.mxu0 0.0
    %294 = vmatpush2.msra.mxu0 0.0
    %295 = vmatprep.subr.mxu0 0.0
    %296 = vmatpush2.msra.mxu0 0.0
    %297 = vmatprep.subr.mxu0 0.0
    %298 = vmatpush2.msra.mxu0 0.0
    %299 = vmatprep.subr.mxu0 0.0
    %300 = vmatpush2.msra.mxu0 0.0
    %301 = vmatprep.subr.mxu0 0.0
    %302 = vmatpush2.msra.mxu0 0.0
    %303 = vmatprep.subr.mxu0 0.0
    %304 = vmatpush2.msra.mxu0 0.0
    %305 = vmatprep.subr.mxu0 0.0
    %306 = vmatpush2.msra.mxu0 0.0
    %307 = vmatprep.subr.mxu0 0.0
    %308 = vmatpush2.msra.mxu0 0.0
    %309 = vmatprep.subr.mxu0 0.0
    %310 = vmatpush2.msra.mxu0 0.0
    %311 = vmatprep.mubr.f32.mxu0 0.0
    %312 = vmatmul.mubr.f32.gmra.mxu0 %v242
    %v313 = vpop.f32.mrf.mxu0
    %v314 = vadd.f32 %v238, %v313
    %v315 = vpop.f32.mrf.mxu0
    %316 = vdwg.mxu0
    %v317 = vmax.f32 %v314, 0.0
    %v318 = vld [vmem:[%s8] sm:$0xff]
    %v319 = vld [vmem:[%s8 + $0x8] sm:$0xff]
    %v320 = vld [vmem:[%s8 + $0x10] sm:$0xff]
    %v321 = vld [vmem:[%s8 + $0x18] sm:$0xff]
    %v322 = vld [vmem:[%s8 + $0x20] sm:$0xff]
    %v323 = vld [vmem:[%s8 + $0x28] sm:$0xff]
    %v324 = vld [vmem:[%s8 + $0x30] sm:$0xff]
    %v325 = vld [vmem:[%s8 + $0x38] sm:$0xff]
    %vm326 = vcmask 261120
    %v328 = vsel %vm326, %v317, 0
    %330 = vmatprep.subr.mxu0 0.0
    %331 = vmatpush1.msra.mxu0 0.0
    %332 = vmatprep.subr.mxu0 0.0
    %333 = vmatpush1.msra.mxu0 0.0
    %334 = vmatprep.subr.mxu0 0.0
    %335 = vmatpush1.msra.mxu0 0.0
    %336 = vmatprep.subr.mxu0 0.0
    %337 = vmatpush1.msra.mxu0 0.0
    %338 = vmatprep.subr.mxu0 0.0
    %339 = vmatpush1.msra.mxu0 0.0
    %340 = vmatprep.subr.mxu0 0.0
    %341 = vmatpush1.msra.mxu0 0.0
    %342 = vmatprep.subr.mxu0 0.0
    %343 = vmatpush1.msra.mxu0 0.0
    %344 = vmatprep.subr.mxu0 0.0
    %345 = vmatpush1.msra.mxu0 0.0
    %346 = vmatprep.subr.mxu0 0.0
    %347 = vmatpush1.msra.mxu0 0.0
    %348 = vmatprep.subr.mxu0 0.0
    %349 = vmatpush1.msra.mxu0 0.0
    %350 = vmatprep.subr.mxu0 0.0
    %351 = vmatpush1.msra.mxu0 0.0
    %352 = vmatprep.subr.mxu0 0.0
    %353 = vmatpush1.msra.mxu0 0.0
    %354 = vmatprep.subr.mxu0 %v325
    %355 = vmatpush1.msra.mxu0 %v324
    %356 = vmatprep.subr.mxu0 %v323
    %357 = vmatpush1.msra.mxu0 %v322
    %358 = vmatprep.subr.mxu0 %v321
    %359 = vmatpush1.msra.mxu0 %v320
    %360 = vmatprep.subr.mxu0 %v319
    %361 = vmatpush1.msra.mxu0 %v318
    %362 = vmatprep.subr.mxu0 0.0
    %363 = vmatpush2.msra.mxu0 0.0
    %364 = vmatprep.subr.mxu0 0.0
    %365 = vmatpush2.msra.mxu0 0.0
    %366 = vmatprep.subr.mxu0 0.0
    %367 = vmatpush2.msra.mxu0 0.0
    %368 = vmatprep.subr.mxu0 0.0
    %369 = vmatpush2.msra.mxu0 0.0
    %370 = vmatprep.subr.mxu0 0.0
    %371 = vmatpush2.msra.mxu0 0.0
    %372 = vmatprep.subr.mxu0 0.0
    %373 = vmatpush2.msra.mxu0 0.0
    %374 = vmatprep.subr.mxu0 0.0
    %375 = vmatpush2.msra.mxu0 0.0
    %376 = vmatprep.subr.mxu0 0.0
    %377 = vmatpush2.msra.mxu0 0.0
    %378 = vmatprep.subr.mxu0 0.0
    %379 = vmatpush2.msra.mxu0 0.0
    %380 = vmatprep.subr.mxu0 0.0
    %381 = vmatpush2.msra.mxu0 0.0
    %382 = vmatprep.subr.mxu0 0.0
    %383 = vmatpush2.msra.mxu0 0.0
    %384 = vmatprep.subr.mxu0 0.0
    %385 = vmatpush2.msra.mxu0 0.0
    %386 = vmatprep.subr.mxu0 0.0
    %387 = vmatpush2.msra.mxu0 0.0
    %388 = vmatprep.subr.mxu0 0.0
    %389 = vmatpush2.msra.mxu0 0.0
    %390 = vmatprep.subr.mxu0 0.0
    %391 = vmatpush2.msra.mxu0 0.0
    %392 = vmatprep.subr.mxu0 0.0
    %393 = vmatpush2.msra.mxu0 0.0
    %394 = vmatprep.mubr.f32.mxu0 0.0
    %395 = vmatmul.mubr.f32.gmra.mxu0 %v328
    %v396 = vpop.f32.mrf.mxu0
    %v397 = vadd.f32 0.0, %v396
    %v398 = vpop.f32.mrf.mxu0
    %v399 = vadd.f32 0.0, %v398
    %400 = vdwg.mxu0
    %v401 = vld [vmem:[%s9] sm:$0xff]
    %v402 = vld [vmem:[%s9 + $0x8] sm:$0xff]
    %v403 = vld [vmem:[%s9 + $0x10] sm:$0xff]
    %v404 = vld [vmem:[%s9 + $0x18] sm:$0xff]
    %v405 = vld [vmem:[%s9 + $0x20] sm:$0xff]
    %v406 = vld [vmem:[%s9 + $0x28] sm:$0xff]
    %v407 = vld [vmem:[%s9 + $0x30] sm:$0xff]
    %v408 = vld [vmem:[%s9 + $0x38] sm:$0xff]
    %v409 = vld [vmem:[%s9 + $0x40] sm:$0xff]
    %v410 = vld [vmem:[%s9 + $0x48] sm:$0xff]
    %v411 = vld [vmem:[%s9 + $0x50] sm:$0xff]
    %v412 = vld [vmem:[%s9 + $0x58] sm:$0xff]
    %v413 = vld [vmem:[%s9 + $0x60] sm:$0xff]
    %v414 = vld [vmem:[%s9 + $0x68] sm:$0xff]
    %v415 = vld [vmem:[%s9 + $0x70] sm:$0xff]
    %v416 = vld [vmem:[%s9 + $0x78] sm:$0xff]
    %v417 = vld [vmem:[%s9 + $0x80] sm:$0xff]
    %v418 = vld [vmem:[%s9 + $0x88] sm:$0xff]
    %v419 = vld [vmem:[%s9 + $0x90] sm:$0xff]
    %v420 = vld [vmem:[%s9 + $0x98] sm:$0xff]
    %v421 = vld [vmem:[%s9 + $0xa0] sm:$0xff]
    %v422 = vld [vmem:[%s9 + $0xa8] sm:$0xff]
    %v423 = vld [vmem:[%s9 + $0xb0] sm:$0xff]
    %v424 = vld [vmem:[%s9 + $0xb8] sm:$0xff]
    %vm425 = vcmask 523264
    %v427 = vsel %vm425, %v399, 0
    %429 = vmatprep.subr.mxu0 0.0
    %430 = vmatpush1.msra.mxu0 %v416
    %431 = vmatprep.subr.mxu0 0.0
    %432 = vmatpush1.msra.mxu0 %v415
    %433 = vmatprep.subr.mxu0 0.0
    %434 = vmatpush1.msra.mxu0 %v414
    %435 = vmatprep.subr.mxu0 0.0
    %436 = vmatpush1.msra.mxu0 %v413
    %437 = vmatprep.subr.mxu0 0.0
    %438 = vmatpush1.msra.mxu0 %v412
    %439 = vmatprep.subr.mxu0 0.0
    %440 = vmatpush1.msra.mxu0 %v411
    %441 = vmatprep.subr.mxu0 0.0
    %442 = vmatpush1.msra.mxu0 %v410
    %443 = vmatprep.subr.mxu0 0.0
    %444 = vmatpush1.msra.mxu0 %v409
    %445 = vmatprep.subr.mxu0 0.0
    %446 = vmatpush1.msra.mxu0 %v408
    %447 = vmatprep.subr.mxu0 0.0
    %448 = vmatpush1.msra.mxu0 %v407
    %449 = vmatprep.subr.mxu0 0.0
    %450 = vmatpush1.msra.mxu0 %v406
    %451 = vmatprep.subr.mxu0 0.0
    %452 = vmatpush1.msra.mxu0 %v405
    %453 = vmatprep.subr.mxu0 0.0
    %454 = vmatpush1.msra.mxu0 %v404
    %455 = vmatprep.subr.mxu0 0.0
    %456 = vmatpush1.msra.mxu0 %v403
    %457 = vmatprep.subr.mxu0 0.0
    %458 = vmatpush1.msra.mxu0 %v402
    %459 = vmatprep.subr.mxu0 0.0
    %460 = vmatpush1.msra.mxu0 %v401
    %461 = vmatprep.subr.mxu0 0.0
    %462 = vmatpush2.msra.mxu0 0.0
    %463 = vmatprep.subr.mxu0 0.0
    %464 = vmatpush2.msra.mxu0 0.0
    %465 = vmatprep.subr.mxu0 0.0
    %466 = vmatpush2.msra.mxu0 0.0
    %467 = vmatprep.subr.mxu0 0.0
    %468 = vmatpush2.msra.mxu0 0.0
    %469 = vmatprep.subr.mxu0 0.0
    %470 = vmatpush2.msra.mxu0 0.0
    %471 = vmatprep.subr.mxu0 0.0
    %472 = vmatpush2.msra.mxu0 0.0
    %473 = vmatprep.subr.mxu0 0.0
    %474 = vmatpush2.msra.mxu0 0.0
    %475 = vmatprep.subr.mxu0 0.0
    %476 = vmatpush2.msra.mxu0 0.0
    %477 = vmatprep.subr.mxu0 0.0
    %478 = vmatpush2.msra.mxu0 %v424
    %479 = vmatprep.subr.mxu0 0.0
    %480 = vmatpush2.msra.mxu0 %v423
    %481 = vmatprep.subr.mxu0 0.0
    %482 = vmatpush2.msra.mxu0 %v422
    %483 = vmatprep.subr.mxu0 0.0
    %484 = vmatpush2.msra.mxu0 %v421
    %485 = vmatprep.subr.mxu0 0.0
    %486 = vmatpush2.msra.mxu0 %v420
    %487 = vmatprep.subr.mxu0 0.0
    %488 = vmatpush2.msra.mxu0 %v419
    %489 = vmatprep.subr.mxu0 0.0
    %490 = vmatpush2.msra.mxu0 %v418
    %491 = vmatprep.subr.mxu0 0.0
    %492 = vmatpush2.msra.mxu0 %v417
    %493 = vmatprep.mubr.f32.mxu0 %v427
    %494 = vmatmul.mubr.f32.gmra.mxu0 %v397
    %v495 = vpop.f32.mrf.mxu0
    %v496 = vadd.f32 0.0, %v495
    %v497 = vpop.f32.mrf.mxu0
    %498 = vdwg.mxu0
    %500 = vrot.lane.b32.xlu0 %v496, 127
    %v501 = vpop.permute.xlu0 %500
    %503 = vxpose.xlu0.b32.start [1/16] %v501, 128
    %504 = vxpose.xlu0.b32.cont [2/16] 0.0, 128
    %505 = vxpose.xlu0.b32.cont [3/16] 0.0, 128
    %506 = vxpose.xlu0.b32.cont [4/16] 0.0, 128
    %507 = vxpose.xlu0.b32.cont [5/16] 0.0, 128
    %508 = vxpose.xlu0.b32.cont [6/16] 0.0, 128
    %509 = vxpose.xlu0.b32.cont [7/16] 0.0, 128
    %510 = vxpose.xlu0.b32.cont [8/16] 0.0, 128
    %511 = vxpose.xlu0.b32.cont [9/16] 0.0, 128
    %512 = vxpose.xlu0.b32.cont [10/16] 0.0, 128
    %513 = vxpose.xlu0.b32.cont [11/16] 0.0, 128
    %514 = vxpose.xlu0.b32.cont [12/16] 0.0, 128
    %515 = vxpose.xlu0.b32.cont [13/16] 0.0, 128
    %516 = vxpose.xlu0.b32.cont [14/16] 0.0, 128
    %517 = vxpose.xlu0.b32.cont [15/16] 0.0, 128
    %518 = vxpose.xlu0.b32.end [16/16] 0.0, 128
    %v519 = vpop.trf.xlu0
    %v520 = vpop.trf.xlu0
    %v521 = vpop.trf.xlu0
    %v522 = vpop.trf.xlu0
    %v523 = vpop.trf.xlu0
    %v524 = vpop.trf.xlu0
    %v525 = vpop.trf.xlu0
    %v526 = vpop.trf.xlu0
    %v527 = vpop.trf.xlu0
    %v528 = vpop.trf.xlu0
    %v529 = vpop.trf.xlu0
    %v530 = vpop.trf.xlu0
    %v531 = vpop.trf.xlu0
    %v532 = vpop.trf.xlu0
    %v533 = vpop.trf.xlu0
    %v534 = vpop.trf.xlu0
    %535 = vset.pattern.permute.xlu0 0
    %536 = vperm.xlu0 %535, %v496
    %v537 = vpop.permute.xlu0 %536
    %v539 = vlaneseq
    %v540 = vshrl.u32 %v539, 7
    %v541 = vsub.s32 0, %v540
    %v542 = vrot.slane %v519, %v541
    %v543 = vadd.f32 %v537, %v542
    %vm544 = vcmp.gt.f32.partialorder %v543, 0.0
    %v545 = vmul.f32 %v543, 0.2
    %v546 = vsel %vm544, %v543, %v545
    %vm547 = vcmp.gt.f32.partialorder %v46, 0.0
    %v548 = vsel %vm547, %v546, -9e+15
    %vm549 = vcmask 64512
    %v550 = vsel %vm549, %v548, -inf
    %551 = vmax.xlane.f32.xlu0 %v550
    %v552 = vpop.xlane.xlu0 %551
    %v553 = vsub.f32 %v548, %v552
    %v554 = vmul.f32 %v553, 1.442695
    %v555 = vpow.pop %v554
    %v556 = vsel %vm549, %v555, 0.0
    %557 = vadd.xlane.f32.xlu0 %v556
    %v558 = vpop.xlane.xlu0 %557
    %v559 = vrcp.pop %v558
    %v560 = vmul.f32 %v555, %v559
    %v562 = vsel %vm549, %v560, 0
    %564 = vmatprep.subr.mxu0 0.0
    %565 = vmatpush1.msra.mxu0 0.0
    %566 = vmatprep.subr.mxu0 0.0
    %567 = vmatpush1.msra.mxu0 0.0
    %568 = vmatprep.subr.mxu0 0.0
    %569 = vmatpush1.msra.mxu0 0.0
    %570 = vmatprep.subr.mxu0 0.0
    %571 = vmatpush1.msra.mxu0 0.0
    %572 = vmatprep.subr.mxu0 0.0
    %573 = vmatpush1.msra.mxu0 0.0
    %574 = vmatprep.subr.mxu0 0.0
    %575 = vmatpush1.msra.mxu0 0.0
    %576 = vmatprep.subr.mxu0 0.0
    %577 = vmatpush1.msra.mxu0 0.0
    %578 = vmatprep.subr.mxu0 0.0
    %579 = vmatpush1.msra.mxu0 0.0
    %580 = vmatprep.subr.mxu0 0.0
    %581 = vmatpush1.msra.mxu0 0.0
    %582 = vmatprep.subr.mxu0 0.0
    %583 = vmatpush1.msra.mxu0 0.0
    %584 = vmatprep.subr.mxu0 0.0
    %585 = vmatpush1.msra.mxu0 0.0
    %586 = vmatprep.subr.mxu0 0.0
    %587 = vmatpush1.msra.mxu0 0.0
    %588 = vmatprep.subr.mxu0 0.0
    %589 = vmatpush1.msra.mxu0 0.0
    %590 = vmatprep.subr.mxu0 0.0
    %591 = vmatpush1.msra.mxu0 0.0
    %592 = vmatprep.subr.mxu0 0.0
    %593 = vmatpush1.msra.mxu0 0.0
    %594 = vmatprep.subr.mxu0 0.0
    %595 = vmatpush1.msra.mxu0 %v397
    %596 = vmatprep.subr.mxu0 0.0
    %597 = vmatpush2.msra.mxu0 0.0
    %598 = vmatprep.subr.mxu0 0.0
    %599 = vmatpush2.msra.mxu0 0.0
    %600 = vmatprep.subr.mxu0 0.0
    %601 = vmatpush2.msra.mxu0 0.0
    %602 = vmatprep.subr.mxu0 0.0
    %603 = vmatpush2.msra.mxu0 0.0
    %604 = vmatprep.subr.mxu0 0.0
    %605 = vmatpush2.msra.mxu0 0.0
    %606 = vmatprep.subr.mxu0 0.0
    %607 = vmatpush2.msra.mxu0 0.0
    %608 = vmatprep.subr.mxu0 0.0
    %609 = vmatpush2.msra.mxu0 0.0
    %610 = vmatprep.subr.mxu0 0.0
    %611 = vmatpush2.msra.mxu0 0.0
    %612 = vmatprep.subr.mxu0 0.0
    %613 = vmatpush2.msra.mxu0 0.0
    %614 = vmatprep.subr.mxu0 0.0
    %615 = vmatpush2.msra.mxu0 0.0
    %616 = vmatprep.subr.mxu0 0.0
    %617 = vmatpush2.msra.mxu0 0.0
    %618 = vmatprep.subr.mxu0 0.0
    %619 = vmatpush2.msra.mxu0 0.0
    %620 = vmatprep.subr.mxu0 0.0
    %621 = vmatpush2.msra.mxu0 0.0
    %622 = vmatprep.subr.mxu0 0.0
    %623 = vmatpush2.msra.mxu0 0.0
    %624 = vmatprep.subr.mxu0 0.0
    %625 = vmatpush2.msra.mxu0 0.0
    %626 = vmatprep.subr.mxu0 0.0
    %627 = vmatpush2.msra.mxu0 0.0
    %628 = vmatprep.mubr.f32.mxu0 0.0
    %629 = vmatmul.mubr.f32.gmra.mxu0 %v562
    %v630 = vpop.f32.mrf.mxu0
    %v631 = vadd.f32 0.0, %v630
    %v632 = vpop.f32.mrf.mxu0
    %633 = vdwg.mxu0
    %vm634 = vcmp.gt.f32.partialorder %v631, 0.0
    %v635 = vmin.f32 %v631, 0.0
    %v636 = vmul.f32 %v635, 1.442695
    %v637 = vpow.pop %v636
    %v638 = vsub.f32 %v637, 1.0
    %v639 = vsel %vm634, %v631, %v638
    %640 = vst.msk [vmem:[#allocation2] sm:$0xff] %vm425, %v639
    %641 = vrot.lane.b32.xlu0 %v496, 125
    %v642 = vpop.permute.xlu0 %641
    %644 = vxpose.xlu0.b32.start [1/16] %v642, 128
    %645 = vxpose.xlu0.b32.cont [2/16] 0.0, 128
    %646 = vxpose.xlu0.b32.cont [3/16] 0.0, 128
    %647 = vxpose.xlu0.b32.cont [4/16] 0.0, 128
    %648 = vxpose.xlu0.b32.cont [5/16] 0.0, 128
    %649 = vxpose.xlu0.b32.cont [6/16] 0.0, 128
    %650 = vxpose.xlu0.b32.cont [7/16] 0.0, 128
    %651 = vxpose.xlu0.b32.cont [8/16] 0.0, 128
    %652 = vxpose.xlu0.b32.cont [9/16] 0.0, 128
    %653 = vxpose.xlu0.b32.cont [10/16] 0.0, 128
    %654 = vxpose.xlu0.b32.cont [11/16] 0.0, 128
    %655 = vxpose.xlu0.b32.cont [12/16] 0.0, 128
    %656 = vxpose.xlu0.b32.cont [13/16] 0.0, 128
    %657 = vxpose.xlu0.b32.cont [14/16] 0.0, 128
    %658 = vxpose.xlu0.b32.cont [15/16] 0.0, 128
    %659 = vxpose.xlu0.b32.end [16/16] 0.0, 128
    %v660 = vpop.trf.xlu0
    %v661 = vpop.trf.xlu0
    %v662 = vpop.trf.xlu0
    %v663 = vpop.trf.xlu0
    %v664 = vpop.trf.xlu0
    %v665 = vpop.trf.xlu0
    %v666 = vpop.trf.xlu0
    %v667 = vpop.trf.xlu0
    %v668 = vpop.trf.xlu0
    %v669 = vpop.trf.xlu0
    %v670 = vpop.trf.xlu0
    %v671 = vpop.trf.xlu0
    %v672 = vpop.trf.xlu0
    %v673 = vpop.trf.xlu0
    %v674 = vpop.trf.xlu0
    %v675 = vpop.trf.xlu0
    %676 = vset.pattern.permute.xlu0 2
    %677 = vperm.xlu0 %676, %v496
    %v678 = vpop.permute.xlu0 %677
    %v680 = vlaneseq
    %v681 = vshrl.u32 %v680, 7
    %v682 = vsub.s32 0, %v681
    %v683 = vrot.slane %v660, %v682
    %v684 = vadd.f32 %v678, %v683
    %vm685 = vcmp.gt.f32.partialorder %v684, 0.0
    %v686 = vmul.f32 %v684, 0.2
    %v687 = vsel %vm685, %v684, %v686
    %v688 = vsel %vm547, %v687, -9e+15
    %v689 = vsel %vm549, %v688, -inf
    %690 = vmax.xlane.f32.xlu0 %v689
    %v691 = vpop.xlane.xlu0 %690
    %v692 = vsub.f32 %v688, %v691
    %v693 = vmul.f32 %v692, 1.442695
    %v694 = vpow.pop %v693
    %v695 = vsel %vm549, %v694, 0.0
    %696 = vadd.xlane.f32.xlu0 %v695
    %v697 = vpop.xlane.xlu0 %696
    %v698 = vrcp.pop %v697
    %v699 = vmul.f32 %v694, %v698
    %701 = vrot.lane.b32.xlu0 %v397, 64
    %v702 = vpop.permute.xlu0 %701
    %v705 = vsel %vm549, %v699, 0
    %707 = vmatprep.subr.mxu0 0.0
    %708 = vmatpush1.msra.mxu0 0.0
    %709 = vmatprep.subr.mxu0 0.0
    %710 = vmatpush1.msra.mxu0 0.0
    %711 = vmatprep.subr.mxu0 0.0
    %712 = vmatpush1.msra.mxu0 0.0
    %713 = vmatprep.subr.mxu0 0.0
    %714 = vmatpush1.msra.mxu0 0.0
    %715 = vmatprep.subr.mxu0 0.0
    %716 = vmatpush1.msra.mxu0 0.0
    %717 = vmatprep.subr.mxu0 0.0
    %718 = vmatpush1.msra.mxu0 0.0
    %719 = vmatprep.subr.mxu0 0.0
    %720 = vmatpush1.msra.mxu0 0.0
    %721 = vmatprep.subr.mxu0 0.0
    %722 = vmatpush1.msra.mxu0 0.0
    %723 = vmatprep.subr.mxu0 0.0
    %724 = vmatpush1.msra.mxu0 0.0
    %725 = vmatprep.subr.mxu0 0.0
    %726 = vmatpush1.msra.mxu0 0.0
    %727 = vmatprep.subr.mxu0 0.0
    %728 = vmatpush1.msra.mxu0 0.0
    %729 = vmatprep.subr.mxu0 0.0
    %730 = vmatpush1.msra.mxu0 0.0
    %731 = vmatprep.subr.mxu0 0.0
    %732 = vmatpush1.msra.mxu0 0.0
    %733 = vmatprep.subr.mxu0 0.0
    %734 = vmatpush1.msra.mxu0 0.0
    %735 = vmatprep.subr.mxu0 0.0
    %736 = vmatpush1.msra.mxu0 0.0
    %737 = vmatprep.subr.mxu0 0.0
    %738 = vmatpush1.msra.mxu0 %v702
    %739 = vmatprep.subr.mxu0 0.0
    %740 = vmatpush2.msra.mxu0 0.0
    %741 = vmatprep.subr.mxu0 0.0
    %742 = vmatpush2.msra.mxu0 0.0
    %743 = vmatprep.subr.mxu0 0.0
    %744 = vmatpush2.msra.mxu0 0.0
    %745 = vmatprep.subr.mxu0 0.0
    %746 = vmatpush2.msra.mxu0 0.0
    %747 = vmatprep.subr.mxu0 0.0
    %748 = vmatpush2.msra.mxu0 0.0
    %749 = vmatprep.subr.mxu0 0.0
    %750 = vmatpush2.msra.mxu0 0.0
    %751 = vmatprep.subr.mxu0 0.0
    %752 = vmatpush2.msra.mxu0 0.0
    %753 = vmatprep.subr.mxu0 0.0
    %754 = vmatpush2.msra.mxu0 0.0
    %755 = vmatprep.subr.mxu0 0.0
    %756 = vmatpush2.msra.mxu0 0.0
    %757 = vmatprep.subr.mxu0 0.0
    %758 = vmatpush2.msra.mxu0 0.0
    %759 = vmatprep.subr.mxu0 0.0
    %760 = vmatpush2.msra.mxu0 0.0
    %761 = vmatprep.subr.mxu0 0.0
    %762 = vmatpush2.msra.mxu0 0.0
    %763 = vmatprep.subr.mxu0 0.0
    %764 = vmatpush2.msra.mxu0 0.0
    %765 = vmatprep.subr.mxu0 0.0
    %766 = vmatpush2.msra.mxu0 0.0
    %767 = vmatprep.subr.mxu0 0.0
    %768 = vmatpush2.msra.mxu0 0.0
    %769 = vmatprep.subr.mxu0 0.0
    %770 = vmatpush2.msra.mxu0 0.0
    %771 = vmatprep.mubr.f32.mxu0 0.0
    %772 = vmatmul.mubr.f32.gmra.mxu0 %v705
    %v773 = vpop.f32.mrf.mxu0
    %v774 = vadd.f32 0.0, %v773
    %v775 = vpop.f32.mrf.mxu0
    %776 = vdwg.mxu0
    %vm777 = vcmp.gt.f32.partialorder %v774, 0.0
    %v778 = vmin.f32 %v774, 0.0
    %v779 = vmul.f32 %v778, 1.442695
    %v780 = vpow.pop %v779
    %v781 = vsub.f32 %v780, 1.0
    %v782 = vsel %vm777, %v774, %v781
    %784 = vrot.lane.b32.xlu0 %v782, 64
    %v785 = vpop.permute.xlu0 %784
    %vm787 = vcmask 1048064
    %788 = vst.msk [vmem:[#allocation2] sm:$0xff] %vm787, %v785
    %789 = vrot.lane.b32.xlu0 %v496, 123
    %v790 = vpop.permute.xlu0 %789
    %792 = vxpose.xlu0.b32.start [1/16] %v790, 128
    %793 = vxpose.xlu0.b32.cont [2/16] 0.0, 128
    %794 = vxpose.xlu0.b32.cont [3/16] 0.0, 128
    %795 = vxpose.xlu0.b32.cont [4/16] 0.0, 128
    %796 = vxpose.xlu0.b32.cont [5/16] 0.0, 128
    %797 = vxpose.xlu0.b32.cont [6/16] 0.0, 128
    %798 = vxpose.xlu0.b32.cont [7/16] 0.0, 128
    %799 = vxpose.xlu0.b32.cont [8/16] 0.0, 128
    %800 = vxpose.xlu0.b32.cont [9/16] 0.0, 128
    %801 = vxpose.xlu0.b32.cont [10/16] 0.0, 128
    %802 = vxpose.xlu0.b32.cont [11/16] 0.0, 128
    %803 = vxpose.xlu0.b32.cont [12/16] 0.0, 128
    %804 = vxpose.xlu0.b32.cont [13/16] 0.0, 128
    %805 = vxpose.xlu0.b32.cont [14/16] 0.0, 128
    %806 = vxpose.xlu0.b32.cont [15/16] 0.0, 128
    %807 = vxpose.xlu0.b32.end [16/16] 0.0, 128
    %v808 = vpop.trf.xlu0
    %v809 = vpop.trf.xlu0
    %v810 = vpop.trf.xlu0
    %v811 = vpop.trf.xlu0
    %v812 = vpop.trf.xlu0
    %v813 = vpop.trf.xlu0
    %v814 = vpop.trf.xlu0
    %v815 = vpop.trf.xlu0
    %v816 = vpop.trf.xlu0
    %v817 = vpop.trf.xlu0
    %v818 = vpop.trf.xlu0
    %v819 = vpop.trf.xlu0
    %v820 = vpop.trf.xlu0
    %v821 = vpop.trf.xlu0
    %v822 = vpop.trf.xlu0
    %v823 = vpop.trf.xlu0
    %824 = vset.pattern.permute.xlu0 4
    %825 = vperm.xlu0 %824, %v496
    %v826 = vpop.permute.xlu0 %825
    %v828 = vlaneseq
    %v829 = vshrl.u32 %v828, 7
    %v830 = vsub.s32 0, %v829
    %v831 = vrot.slane %v808, %v830
    %v832 = vadd.f32 %v826, %v831
    %vm833 = vcmp.gt.f32.partialorder %v832, 0.0
    %v834 = vmul.f32 %v832, 0.2
    %v835 = vsel %vm833, %v832, %v834
    %v836 = vsel %vm547, %v835, -9e+15
    %v837 = vsel %vm549, %v836, -inf
    %838 = vmax.xlane.f32.xlu0 %v837
    %v839 = vpop.xlane.xlu0 %838
    %v840 = vsub.f32 %v836, %v839
    %v841 = vmul.f32 %v840, 1.442695
    %v842 = vpow.pop %v841
    %v843 = vsel %vm549, %v842, 0.0
    %844 = vadd.xlane.f32.xlu0 %v843
    %v845 = vpop.xlane.xlu0 %844
    %v846 = vrcp.pop %v845
    %v847 = vmul.f32 %v842, %v846
    %v849 = vsel %vm549, %v847, 0
    %851 = vmatprep.subr.mxu0 0.0
    %852 = vmatpush1.msra.mxu0 0.0
    %853 = vmatprep.subr.mxu0 0.0
    %854 = vmatpush1.msra.mxu0 0.0
    %855 = vmatprep.subr.mxu0 0.0
    %856 = vmatpush1.msra.mxu0 0.0
    %857 = vmatprep.subr.mxu0 0.0
    %858 = vmatpush1.msra.mxu0 0.0
    %859 = vmatprep.subr.mxu0 0.0
    %860 = vmatpush1.msra.mxu0 0.0
    %861 = vmatprep.subr.mxu0 0.0
    %862 = vmatpush1.msra.mxu0 0.0
    %863 = vmatprep.subr.mxu0 0.0
    %864 = vmatpush1.msra.mxu0 0.0
    %865 = vmatprep.subr.mxu0 0.0
    %866 = vmatpush1.msra.mxu0 0.0
    %867 = vmatprep.subr.mxu0 0.0
    %868 = vmatpush1.msra.mxu0 0.0
    %869 = vmatprep.subr.mxu0 0.0
    %870 = vmatpush1.msra.mxu0 0.0
    %871 = vmatprep.subr.mxu0 0.0
    %872 = vmatpush1.msra.mxu0 0.0
    %873 = vmatprep.subr.mxu0 0.0
    %874 = vmatpush1.msra.mxu0 0.0
    %875 = vmatprep.subr.mxu0 0.0
    %876 = vmatpush1.msra.mxu0 0.0
    %877 = vmatprep.subr.mxu0 0.0
    %878 = vmatpush1.msra.mxu0 0.0
    %879 = vmatprep.subr.mxu0 0.0
    %880 = vmatpush1.msra.mxu0 0.0
    %881 = vmatprep.subr.mxu0 0.0
    %882 = vmatpush1.msra.mxu0 %v399
    %883 = vmatprep.subr.mxu0 0.0
    %884 = vmatpush2.msra.mxu0 0.0
    %885 = vmatprep.subr.mxu0 0.0
    %886 = vmatpush2.msra.mxu0 0.0
    %887 = vmatprep.subr.mxu0 0.0
    %888 = vmatpush2.msra.mxu0 0.0
    %889 = vmatprep.subr.mxu0 0.0
    %890 = vmatpush2.msra.mxu0 0.0
    %891 = vmatprep.subr.mxu0 0.0
    %892 = vmatpush2.msra.mxu0 0.0
    %893 = vmatprep.subr.mxu0 0.0
    %894 = vmatpush2.msra.mxu0 0.0
    %895 = vmatprep.subr.mxu0 0.0
    %896 = vmatpush2.msra.mxu0 0.0
    %897 = vmatprep.subr.mxu0 0.0
    %898 = vmatpush2.msra.mxu0 0.0
    %899 = vmatprep.subr.mxu0 0.0
    %900 = vmatpush2.msra.mxu0 0.0
    %901 = vmatprep.subr.mxu0 0.0
    %902 = vmatpush2.msra.mxu0 0.0
    %903 = vmatprep.subr.mxu0 0.0
    %904 = vmatpush2.msra.mxu0 0.0
    %905 = vmatprep.subr.mxu0 0.0
    %906 = vmatpush2.msra.mxu0 0.0
    %907 = vmatprep.subr.mxu0 0.0
    %908 = vmatpush2.msra.mxu0 0.0
    %909 = vmatprep.subr.mxu0 0.0
    %910 = vmatpush2.msra.mxu0 0.0
    %911 = vmatprep.subr.mxu0 0.0
    %912 = vmatpush2.msra.mxu0 0.0
    %913 = vmatprep.subr.mxu0 0.0
    %914 = vmatpush2.msra.mxu0 0.0
    %915 = vmatprep.mubr.f32.mxu0 0.0
    %916 = vmatmul.mubr.f32.gmra.mxu0 %v849
    %v917 = vpop.f32.mrf.mxu0
    %v918 = vadd.f32 0.0, %v917
    %v919 = vpop.f32.mrf.mxu0
    %920 = vdwg.mxu0
    %vm921 = vcmp.gt.f32.partialorder %v918, 0.0
    %v922 = vmin.f32 %v918, 0.0
    %v923 = vmul.f32 %v922, 1.442695
    %v924 = vpow.pop %v923
    %v925 = vsub.f32 %v924, 1.0
    %v926 = vsel %vm921, %v918, %v925
    %927 = vst.msk [vmem:[#allocation2 + $0x8] sm:$0xff] %vm425, %v926
    %v928 = vld [vmem:[#allocation2] sm:$0xff]
    %v929 = vld [vmem:[#allocation2 + $0x8] sm:$0xff]
    %v930 = vld [vmem:[%s10] sm:$0xff]
    %v931 = vld [vmem:[%s10 + $0x8] sm:$0xff]
    %v932 = vld [vmem:[%s10 + $0x10] sm:$0xff]
    %v933 = vld [vmem:[%s10 + $0x18] sm:$0xff]
    %v934 = vld [vmem:[%s10 + $0x20] sm:$0xff]
    %v935 = vld [vmem:[%s10 + $0x28] sm:$0xff]
    %v936 = vld [vmem:[%s10 + $0x30] sm:$0xff]
    %v937 = vld [vmem:[%s10 + $0x38] sm:$0xff]
    %v938 = vld [vmem:[%s10 + $0x40] sm:$0xff]
    %v939 = vld [vmem:[%s10 + $0x48] sm:$0xff]
    %v940 = vld [vmem:[%s10 + $0x50] sm:$0xff]
    %v941 = vld [vmem:[%s10 + $0x58] sm:$0xff]
    %v942 = vld [vmem:[%s10 + $0x60] sm:$0xff]
    %v943 = vld [vmem:[%s10 + $0x68] sm:$0xff]
    %v944 = vld [vmem:[%s10 + $0x70] sm:$0xff]
    %v945 = vld [vmem:[%s10 + $0x78] sm:$0xff]
    %v946 = vld [vmem:[%s10 + $0x80] sm:$0xff]
    %v947 = vld [vmem:[%s10 + $0x88] sm:$0xff]
    %v948 = vld [vmem:[%s10 + $0x90] sm:$0xff]
    %v949 = vld [vmem:[%s10 + $0x98] sm:$0xff]
    %v950 = vld [vmem:[%s10 + $0xa0] sm:$0xff]
    %v951 = vld [vmem:[%s10 + $0xa8] sm:$0xff]
    %v952 = vld [vmem:[%s10 + $0xb0] sm:$0xff]
    %v953 = vld [vmem:[%s10 + $0xb8] sm:$0xff]
    %v955 = vsel %vm425, %v929, 0
    %957 = vmatprep.subr.mxu0 0.0
    %958 = vmatpush1.msra.mxu0 %v945
    %959 = vmatprep.subr.mxu0 0.0
    %960 = vmatpush1.msra.mxu0 %v944
    %961 = vmatprep.subr.mxu0 0.0
    %962 = vmatpush1.msra.mxu0 %v943
    %963 = vmatprep.subr.mxu0 0.0
    %964 = vmatpush1.msra.mxu0 %v942
    %965 = vmatprep.subr.mxu0 0.0
    %966 = vmatpush1.msra.mxu0 %v941
    %967 = vmatprep.subr.mxu0 0.0
    %968 = vmatpush1.msra.mxu0 %v940
    %969 = vmatprep.subr.mxu0 0.0
    %970 = vmatpush1.msra.mxu0 %v939
    %971 = vmatprep.subr.mxu0 0.0
    %972 = vmatpush1.msra.mxu0 %v938
    %973 = vmatprep.subr.mxu0 0.0
    %974 = vmatpush1.msra.mxu0 %v937
    %975 = vmatprep.subr.mxu0 0.0
    %976 = vmatpush1.msra.mxu0 %v936
    %977 = vmatprep.subr.mxu0 0.0
    %978 = vmatpush1.msra.mxu0 %v935
    %979 = vmatprep.subr.mxu0 0.0
    %980 = vmatpush1.msra.mxu0 %v934
    %981 = vmatprep.subr.mxu0 0.0
    %982 = vmatpush1.msra.mxu0 %v933
    %983 = vmatprep.subr.mxu0 0.0
    %984 = vmatpush1.msra.mxu0 %v932
    %985 = vmatprep.subr.mxu0 0.0
    %986 = vmatpush1.msra.mxu0 %v931
    %987 = vmatprep.subr.mxu0 0.0
    %988 = vmatpush1.msra.mxu0 %v930
    %989 = vmatprep.subr.mxu0 0.0
    %990 = vmatpush2.msra.mxu0 0.0
    %991 = vmatprep.subr.mxu0 0.0
    %992 = vmatpush2.msra.mxu0 0.0
    %993 = vmatprep.subr.mxu0 0.0
    %994 = vmatpush2.msra.mxu0 0.0
    %995 = vmatprep.subr.mxu0 0.0
    %996 = vmatpush2.msra.mxu0 0.0
    %997 = vmatprep.subr.mxu0 0.0
    %998 = vmatpush2.msra.mxu0 0.0
    %999 = vmatprep.subr.mxu0 0.0
    %1000 = vmatpush2.msra.mxu0 0.0
    %1001 = vmatprep.subr.mxu0 0.0
    %1002 = vmatpush2.msra.mxu0 0.0
    %1003 = vmatprep.subr.mxu0 0.0
    %1004 = vmatpush2.msra.mxu0 0.0
    %1005 = vmatprep.subr.mxu0 0.0
    %1006 = vmatpush2.msra.mxu0 %v953
    %1007 = vmatprep.subr.mxu0 0.0
    %1008 = vmatpush2.msra.mxu0 %v952
    %1009 = vmatprep.subr.mxu0 0.0
    %1010 = vmatpush2.msra.mxu0 %v951
    %1011 = vmatprep.subr.mxu0 0.0
    %1012 = vmatpush2.msra.mxu0 %v950
    %1013 = vmatprep.subr.mxu0 0.0
    %1014 = vmatpush2.msra.mxu0 %v949
    %1015 = vmatprep.subr.mxu0 0.0
    %1016 = vmatpush2.msra.mxu0 %v948
    %1017 = vmatprep.subr.mxu0 0.0
    %1018 = vmatpush2.msra.mxu0 %v947
    %1019 = vmatprep.subr.mxu0 0.0
    %1020 = vmatpush2.msra.mxu0 %v946
    %1021 = vmatprep.mubr.f32.mxu0 %v955
    %1022 = vmatmul.mubr.f32.gmra.mxu0 %v928
    %v1023 = vpop.f32.mrf.mxu0
    %v1024 = vadd.f32 0.0, %v1023
    %v1025 = vpop.f32.mrf.mxu0
    %1026 = vdwg.mxu0
    %v1027 = vld [vmem:[%s11] sm:$0x3f]
    %vm1028 = vcmask 48128
    %v1030 = vsel %vm1028, %v1024, 0
    %v1033 = vsel %vm183, %v1027, 0
    %1035 = vmatprep.subr.mxu0 0.0
    %1036 = vmatpush1.msra.mxu0 0.0
    %1037 = vmatprep.subr.mxu0 0.0
    %1038 = vmatpush1.msra.mxu0 0.0
    %1039 = vmatprep.subr.mxu0 0.0
    %1040 = vmatpush1.msra.mxu0 0.0
    %1041 = vmatprep.subr.mxu0 0.0
    %1042 = vmatpush1.msra.mxu0 0.0
    %1043 = vmatprep.subr.mxu0 0.0
    %1044 = vmatpush1.msra.mxu0 0.0
    %1045 = vmatprep.subr.mxu0 0.0
    %1046 = vmatpush1.msra.mxu0 0.0
    %1047 = vmatprep.subr.mxu0 0.0
    %1048 = vmatpush1.msra.mxu0 0.0
    %1049 = vmatprep.subr.mxu0 0.0
    %1050 = vmatpush1.msra.mxu0 0.0
    %1051 = vmatprep.subr.mxu0 0.0
    %1052 = vmatpush1.msra.mxu0 0.0
    %1053 = vmatprep.subr.mxu0 0.0
    %1054 = vmatpush1.msra.mxu0 0.0
    %1055 = vmatprep.subr.mxu0 0.0
    %1056 = vmatpush1.msra.mxu0 0.0
    %1057 = vmatprep.subr.mxu0 0.0
    %1058 = vmatpush1.msra.mxu0 0.0
    %1059 = vmatprep.subr.mxu0 0.0
    %1060 = vmatpush1.msra.mxu0 0.0
    %1061 = vmatprep.subr.mxu0 0.0
    %1062 = vmatpush1.msra.mxu0 0.0
    %1063 = vmatprep.subr.mxu0 0.0
    %1064 = vmatpush1.msra.mxu0 0.0
    %1065 = vmatprep.subr.mxu0 0.0
    %1066 = vmatpush1.msra.mxu0 %v1033
    %1067 = vmatprep.subr.mxu0 0.0
    %1068 = vmatpush2.msra.mxu0 0.0
    %1069 = vmatprep.subr.mxu0 0.0
    %1070 = vmatpush2.msra.mxu0 0.0
    %1071 = vmatprep.subr.mxu0 0.0
    %1072 = vmatpush2.msra.mxu0 0.0
    %1073 = vmatprep.subr.mxu0 0.0
    %1074 = vmatpush2.msra.mxu0 0.0
    %1075 = vmatprep.subr.mxu0 0.0
    %1076 = vmatpush2.msra.mxu0 0.0
    %1077 = vmatprep.subr.mxu0 0.0
    %1078 = vmatpush2.msra.mxu0 0.0
    %1079 = vmatprep.subr.mxu0 0.0
    %1080 = vmatpush2.msra.mxu0 0.0
    %1081 = vmatprep.subr.mxu0 0.0
    %1082 = vmatpush2.msra.mxu0 0.0
    %1083 = vmatprep.subr.mxu0 0.0
    %1084 = vmatpush2.msra.mxu0 0.0
    %1085 = vmatprep.subr.mxu0 0.0
    %1086 = vmatpush2.msra.mxu0 0.0
    %1087 = vmatprep.subr.mxu0 0.0
    %1088 = vmatpush2.msra.mxu0 0.0
    %1089 = vmatprep.subr.mxu0 0.0
    %1090 = vmatpush2.msra.mxu0 0.0
    %1091 = vmatprep.subr.mxu0 0.0
    %1092 = vmatpush2.msra.mxu0 0.0
    %1093 = vmatprep.subr.mxu0 0.0
    %1094 = vmatpush2.msra.mxu0 0.0
    %1095 = vmatprep.subr.mxu0 0.0
    %1096 = vmatpush2.msra.mxu0 0.0
    %1097 = vmatprep.subr.mxu0 0.0
    %1098 = vmatpush2.msra.mxu0 0.0
    %1099 = vmatprep.mubr.f32.mxu0 0.0
    %1100 = vmatmul.mubr.f32.gmra.mxu0 %v1030
    %v1101 = vpop.f32.mrf.mxu0
    %v1102 = vadd.f32 0.0, %v1101
    %v1103 = vpop.f32.mrf.mxu0
    %1104 = vdwg.mxu0
    %1106 = vrot.lane.b32.xlu0 %v1102, 127
    %v1107 = vpop.permute.xlu0 %1106
    %1109 = vxpose.xlu0.b32.start [1/16] %v1107, 128
    %1110 = vxpose.xlu0.b32.cont [2/16] 0.0, 128
    %1111 = vxpose.xlu0.b32.cont [3/16] 0.0, 128
    %1112 = vxpose.xlu0.b32.cont [4/16] 0.0, 128
    %1113 = vxpose.xlu0.b32.cont [5/16] 0.0, 128
    %1114 = vxpose.xlu0.b32.cont [6/16] 0.0, 128
    %1115 = vxpose.xlu0.b32.cont [7/16] 0.0, 128
    %1116 = vxpose.xlu0.b32.cont [8/16] 0.0, 128
    %1117 = vxpose.xlu0.b32.cont [9/16] 0.0, 128
    %1118 = vxpose.xlu0.b32.cont [10/16] 0.0, 128
    %1119 = vxpose.xlu0.b32.cont [11/16] 0.0, 128
    %1120 = vxpose.xlu0.b32.cont [12/16] 0.0, 128
    %1121 = vxpose.xlu0.b32.cont [13/16] 0.0, 128
    %1122 = vxpose.xlu0.b32.cont [14/16] 0.0, 128
    %1123 = vxpose.xlu0.b32.cont [15/16] 0.0, 128
    %1124 = vxpose.xlu0.b32.end [16/16] 0.0, 128
    %v1125 = vpop.trf.xlu0
    %v1126 = vpop.trf.xlu0
    %v1127 = vpop.trf.xlu0
    %v1128 = vpop.trf.xlu0
    %v1129 = vpop.trf.xlu0
    %v1130 = vpop.trf.xlu0
    %v1131 = vpop.trf.xlu0
    %v1132 = vpop.trf.xlu0
    %v1133 = vpop.trf.xlu0
    %v1134 = vpop.trf.xlu0
    %v1135 = vpop.trf.xlu0
    %v1136 = vpop.trf.xlu0
    %v1137 = vpop.trf.xlu0
    %v1138 = vpop.trf.xlu0
    %v1139 = vpop.trf.xlu0
    %v1140 = vpop.trf.xlu0
    %1141 = vset.pattern.permute.xlu0 0
    %1142 = vperm.xlu0 %1141, %v1102
    %v1143 = vpop.permute.xlu0 %1142
    %v1145 = vlaneseq
    %v1146 = vshrl.u32 %v1145, 7
    %v1147 = vsub.s32 0, %v1146
    %v1148 = vrot.slane %v1125, %v1147
    %v1149 = vadd.f32 %v1143, %v1148
    %vm1150 = vcmp.gt.f32.partialorder %v1149, 0.0
    %v1151 = vmul.f32 %v1149, 0.2
    %v1152 = vsel %vm1150, %v1149, %v1151
    %v1153 = vsel %vm547, %v1152, -9e+15
    %v1154 = vsel %vm549, %v1153, -inf
    %1155 = vmax.xlane.f32.xlu0 %v1154
    %v1156 = vpop.xlane.xlu0 %1155
    %v1157 = vsub.f32 %v1153, %v1156
    %v1158 = vmul.f32 %v1157, 1.442695
    %v1159 = vpow.pop %v1158
    %v1160 = vsel %vm549, %v1159, 0.0
    %1161 = vadd.xlane.f32.xlu0 %v1160
    %v1162 = vpop.xlane.xlu0 %1161
    %v1163 = vrcp.pop %v1162
    %v1164 = vmul.f32 %v1159, %v1163
    %v1166 = vsel %vm549, %v1164, 0
    %1168 = vmatprep.subr.mxu0 0.0
    %1169 = vmatpush1.msra.mxu0 0.0
    %1170 = vmatprep.subr.mxu0 0.0
    %1171 = vmatpush1.msra.mxu0 0.0
    %1172 = vmatprep.subr.mxu0 0.0
    %1173 = vmatpush1.msra.mxu0 0.0
    %1174 = vmatprep.subr.mxu0 0.0
    %1175 = vmatpush1.msra.mxu0 0.0
    %1176 = vmatprep.subr.mxu0 0.0
    %1177 = vmatpush1.msra.mxu0 0.0
    %1178 = vmatprep.subr.mxu0 0.0
    %1179 = vmatpush1.msra.mxu0 0.0
    %1180 = vmatprep.subr.mxu0 0.0
    %1181 = vmatpush1.msra.mxu0 0.0
    %1182 = vmatprep.subr.mxu0 0.0
    %1183 = vmatpush1.msra.mxu0 0.0
    %1184 = vmatprep.subr.mxu0 0.0
    %1185 = vmatpush1.msra.mxu0 0.0
    %1186 = vmatprep.subr.mxu0 0.0
    %1187 = vmatpush1.msra.mxu0 0.0
    %1188 = vmatprep.subr.mxu0 0.0
    %1189 = vmatpush1.msra.mxu0 0.0
    %1190 = vmatprep.subr.mxu0 0.0
    %1191 = vmatpush1.msra.mxu0 0.0
    %1192 = vmatprep.subr.mxu0 0.0
    %1193 = vmatpush1.msra.mxu0 0.0
    %1194 = vmatprep.subr.mxu0 0.0
    %1195 = vmatpush1.msra.mxu0 0.0
    %1196 = vmatprep.subr.mxu0 0.0
    %1197 = vmatpush1.msra.mxu0 0.0
    %1198 = vmatprep.subr.mxu0 0.0
    %1199 = vmatpush1.msra.mxu0 %v1024
    %1200 = vmatprep.subr.mxu0 0.0
    %1201 = vmatpush2.msra.mxu0 0.0
    %1202 = vmatprep.subr.mxu0 0.0
    %1203 = vmatpush2.msra.mxu0 0.0
    %1204 = vmatprep.subr.mxu0 0.0
    %1205 = vmatpush2.msra.mxu0 0.0
    %1206 = vmatprep.subr.mxu0 0.0
    %1207 = vmatpush2.msra.mxu0 0.0
    %1208 = vmatprep.subr.mxu0 0.0
    %1209 = vmatpush2.msra.mxu0 0.0
    %1210 = vmatprep.subr.mxu0 0.0
    %1211 = vmatpush2.msra.mxu0 0.0
    %1212 = vmatprep.subr.mxu0 0.0
    %1213 = vmatpush2.msra.mxu0 0.0
    %1214 = vmatprep.subr.mxu0 0.0
    %1215 = vmatpush2.msra.mxu0 0.0
    %1216 = vmatprep.subr.mxu0 0.0
    %1217 = vmatpush2.msra.mxu0 0.0
    %1218 = vmatprep.subr.mxu0 0.0
    %1219 = vmatpush2.msra.mxu0 0.0
    %1220 = vmatprep.subr.mxu0 0.0
    %1221 = vmatpush2.msra.mxu0 0.0
    %1222 = vmatprep.subr.mxu0 0.0
    %1223 = vmatpush2.msra.mxu0 0.0
    %1224 = vmatprep.subr.mxu0 0.0
    %1225 = vmatpush2.msra.mxu0 0.0
    %1226 = vmatprep.subr.mxu0 0.0
    %1227 = vmatpush2.msra.mxu0 0.0
    %1228 = vmatprep.subr.mxu0 0.0
    %1229 = vmatpush2.msra.mxu0 0.0
    %1230 = vmatprep.subr.mxu0 0.0
    %1231 = vmatpush2.msra.mxu0 0.0
    %1232 = vmatprep.mubr.f32.mxu0 0.0
    %1233 = vmatmul.mubr.f32.gmra.mxu0 %v1166
    %v1234 = vpop.f32.mrf.mxu0
    %v1235 = vadd.f32 0.0, %v1234
    %v1236 = vpop.f32.mrf.mxu0
    %1237 = vdwg.mxu0
    %vm1238 = vcmp.gt.f32.partialorder %v1235, 0.0
    %v1239 = vmin.f32 %v1235, 0.0
    %v1240 = vmul.f32 %v1239, 1.442695
    %v1241 = vpow.pop %v1240
    %v1242 = vsub.f32 %v1241, 1.0
    %v1243 = vsel %vm1238, %v1235, %v1242
    %v1244 = vsel %vm1028, %v1243, -inf
    %1245 = vmax.xlane.f32.xlu0 %v1244
    %v1246 = vpop.xlane.xlu0 %1245
    %v1247 = vsub.f32 %v1243, %v1246
    %v1248 = vmul.f32 %v1247, 1.442695
    %v1249 = vpow.pop %v1248
    %v1250 = vsel %vm1028, %v1249, 0.0
    %1251 = vadd.xlane.f32.xlu0 %v1250
    %v1252 = vpop.xlane.xlu0 %1251
    %v1253 = vlog2.pop %v1252
    %v1254 = vmul.f32 %v1253, 0.6931472
    %v1255 = vadd.f32 %v1254, %v1246
    %v1256 = vsub.f32 %v1243, %v1255
    %v1257 = vsel %vm1028, %v1256, 0.0
    %1258 = vst [vmem:[#allocation3] sm:$0xff] %v1257
    // Predicated region
    $region54: #{grm_forward.5} parent=1 // pred_check
      _
    $region55: #{grm_forward.5} parent=1 // pred_check_branch
      %1260 = sbr.rel (0) target = $region57
    $region56: #{grm_forward.5} parent=1 // pred_region
      %s1262 = ssub.s32 128, 128
      %1263 = vsyncadd [#allocation4], %s1262
      %s1265 = sshll.u32 [#allocation3], 4
      %s1266 = int_to_ptr.vmem [resolvable:$true] %s1265
      %1268 = dma.vmem_to_hbm [thread:$0]  %s1266, 128, %s13, [#allocation4]
    $region57: #{grm_forward.5} parent=1 // pred_fallthru
      _
    // Predicated region
    $region58: #{grm_forward.5} parent=1 // pred_check
      _
    $region59: #{grm_forward.5} parent=1 // pred_check_branch
      %1270 = sbr.rel (0) target = $region61
    $region60: #{grm_forward.5} parent=1 // pred_region
      %1271 = dma.done [#allocation4], 128
    $region61: #{grm_forward.5} parent=1 // pred_fallthru
      _
    %1272 = vsyncpa [#allocation4], 1

</llo_original>
